<compile_context>
chip_gen: v7x
topology: tpu7x:2x2x1
jax: 0.10.0
libtpu: 0.0.40
codegen_flags: <defaults>
</compile_context>

<pallas_src>
from functools import partial

import numpy as np
import jax
import jax.numpy as jnp
from jax.experimental import pallas as pl
from jax.experimental.pallas import tpu as pltpu


# ----------------------- deterministic parameter setup -----------------------

def _round_up(x: int, m: int) -> int:
    return ((x + m - 1) // m) * m


def _hann_window(win_length: int) -> np.ndarray:
    # torch.hann_window default (periodic=True)
    n = np.arange(win_length)
    return 0.5 - 0.5 * np.cos(2.0 * np.pi * n / win_length)


def _make_window(n_fft: int, win_length: int) -> np.ndarray:
    # torch.stft centers a win_length window inside n_fft
    w = _hann_window(win_length)
    left = (n_fft - win_length) // 2
    out = np.zeros(n_fft, dtype=np.float64)
    out[left:left + win_length] = w
    return out


def _make_dft_basis(n_fft: int):
    # one-sided rFFT as two real matmuls: X_re = C @ x, X_im = (-S) @ x
    n_freq = n_fft // 2 + 1
    n = np.arange(n_fft)[:, None]
    k = np.arange(n_freq)[None, :]
    ang = 2.0 * np.pi * n * k / n_fft
    return np.cos(ang), -np.sin(ang)  # (n_fft, n_freq) each


def _melscale_fbanks(n_freqs, f_min, f_max, n_mels, sample_rate):
    # torchaudio.functional.melscale_fbanks, mel_scale="htk", norm=None
    all_freqs = np.linspace(0, sample_rate // 2, n_freqs)

    def hz_to_mel(f):
        return 2595.0 * np.log10(1.0 + f / 700.0)

    def mel_to_hz(m):
        return 700.0 * (10.0 ** (m / 2595.0) - 1.0)

    m_pts = np.linspace(hz_to_mel(f_min), hz_to_mel(f_max), n_mels + 2)
    f_pts = mel_to_hz(m_pts)
    f_diff = f_pts[1:] - f_pts[:-1]
    slopes = f_pts[None, :] - all_freqs[:, None]          # (n_freqs, n_mels+2)
    down = -slopes[:, :-2] / f_diff[:-1]
    up = slopes[:, 2:] / f_diff[1:]
    return np.maximum(0.0, np.minimum(down, up))           # (n_freqs, n_mels)


# --------------------------------- kernel -----------------------------------

def _mel_kernel(seg_ref, basis_ref, fb_ref, out_ref, *, tf, hop, n_fft, nfk):
    """One (batch, frame-tile) grid step, everything transposed (frames on lanes).

    seg_ref  : (1, 1, hop, tf+halo) bf16, seg[r, s] = x[(tile_start + s)*hop + r]
    basis_ref: (2*nfk, n_fft) bf16  window-folded [w*cos ; -w*sin] DFT basis
    fb_ref   : (nm_pad, nfk) bf16   mel filterbank (transposed)
    out_ref  : (1, nm_pad, tf) bf16 mel tile, already (mel, frame) ordered
    """
    seg = seg_ref[0, 0]                                   # (hop, tf + halo)

    # Reassemble framed matrix transposed: frames_t[q*hop + r, f] = seg[r, f + q].
    # Sublane-dim concat of hop-row blocks (tile aligned) + small lane shifts.
    n_parts = -(-n_fft // hop)
    parts = []
    for q in range(n_parts):
        w = min(hop, n_fft - q * hop)
        parts.append(seg[:w, q:q + tf])
    frames_t = parts[0] if len(parts) == 1 else jnp.concatenate(parts, axis=0)

    # windowed DFT: one MXU matmul, re/im packed along sublanes, f32 accumulate
    ri = jnp.dot(basis_ref[...], frames_t, preferred_element_type=jnp.float32)
    re = ri[:nfk, :]
    im = ri[nfk:, :]
    mag = jnp.sqrt((re * re + im * im).astype(jnp.bfloat16))   # |X|, bf16 EUP sqrt

    # mel projection, stored directly as (n_mels, frames) -> no wrapper transpose
    out_ref[0] = jnp.dot(fb_ref[...], mag,
                         preferred_element_type=jnp.float32).astype(out_ref.dtype)


# -------------------------------- wrapper ------------------------------------

def mel_spectrogram(waveform,
                    *,
                    n_fft: int = 512,
                    hop_length: int = 160,
                    win_length: int = 400,
                    sample_rate: int = 16000,
                    n_mel_channels: int = 80,
                    normalize: bool = False,
                    normalize_log: bool = False,
                    frames_per_tile: int = 512):
    """waveform: (..., T) float -> (..., n_mel_channels, n_frames) float32."""
    lead = waveform.shape[:-1]
    T = waveform.shape[-1]
    wf = waveform.reshape((-1, T)).astype(jnp.float32)
    B = wf.shape[0]

    padding = (n_fft - hop_length) // 2
    x_f32 = jnp.pad(wf, ((0, 0), (padding, padding)), mode="reflect")
    total = T + 2 * padding
    n_frames = (total - n_fft) // hop_length + 1
    if n_frames < 1:
        raise ValueError("waveform too short for a single STFT frame")

    q_parts = -(-n_fft // hop_length)       # each frame spans q_parts hop-segments
    halo = q_parts - 1

    # ---- frame-tile size: bound padding waste, keep >=2 grid steps when useful
    n_tiles = max(1, -(-n_frames // frames_per_tile))
    if B * n_tiles == 1 and n_frames > 128:
        n_tiles = 2                          # give the 2nd TensorCore work (v7x)
    tf_eff = -(-n_frames // n_tiles)
    tf_eff = _round_up(tf_eff, 16 if n_tiles == 1 else 128)
    n_tiles = -(-n_frames // tf_eff)
    n_frames_pad = n_tiles * tf_eff
    tf_h = tf_eff + halo

    # ---- single bf16 pass over the waveform: cast + pad/trim to whole segments
    n_seg = n_frames_pad + halo
    samples_needed = n_seg * hop_length
    x = x_f32.astype(jnp.bfloat16)
    if samples_needed > total:
        x = jnp.pad(x, ((0, 0), (0, samples_needed - total)))
    elif samples_needed < total:
        x = x[:, :samples_needed]
    segs = x.reshape(B, n_seg, hop_length)            # segs[b, s, r] = x[b, s*hop + r]
    if n_tiles == 1:
        seg_halo = segs[:, None]                      # (B, 1, n_seg, hop)
    else:
        seg_idx = (jnp.arange(n_tiles)[:, None] * tf_eff
                   + jnp.arange(tf_h)[None, :])       # (n_tiles, tf_h), 1% halo dup
        seg_halo = segs[:, seg_idx, :]                # (B, n_tiles, tf_h, hop)
    seg_halo_t = jnp.swapaxes(seg_halo, -1, -2)       # (B, n_tiles, hop, tf_h)

    # ---- constants (float64 numpy -> bf16), transposed layout
    n_freq = n_fft // 2 + 1
    nfk = n_freq - 1                                  # drop Nyquist bin (see below)
    nfk_pad = _round_up(nfk, 128)
    nm_pad = _round_up(n_mel_channels, 128)
    window = _make_window(n_fft, win_length)
    cos_np, nsin_np = _make_dft_basis(n_fft)          # (n_fft, n_freq) each
    fb_full = _melscale_fbanks(n_freq, 0.0, float(sample_rate) / 2.0,
                               n_mel_channels, sample_rate)
    basis_t = np.zeros((2 * nfk_pad, n_fft))
    basis_t[:nfk, :] = cos_np[:, :nfk].T * window[None, :]
    basis_t[nfk_pad:nfk_pad + nfk, :] = nsin_np[:, :nfk].T * window[None, :]
    fb_t = np.zeros((nm_pad, nfk_pad))
    fb_t[:n_mel_channels, :nfk] = fb_full[:nfk].T
    basis_b = jnp.asarray(basis_t, jnp.bfloat16)
    fb_b = jnp.asarray(fb_t, jnp.bfloat16)

    # Dropping the Nyquist bin keeps the DFT width MXU friendly; its mel weight
    # is exactly 0 with the default filterbank (top filter ends at sr/2).
    nyq_weight = fb_full[-1]
    need_nyq = bool(np.abs(nyq_weight).max() > 1e-7)

    out = pl.pallas_call(
        partial(_mel_kernel, tf=tf_eff, hop=hop_length, n_fft=n_fft, nfk=nfk_pad),
        out_shape=jax.ShapeDtypeStruct((B, nm_pad, n_frames_pad), jnp.bfloat16),
        grid_spec=pltpu.PrefetchScalarGridSpec(
            num_scalar_prefetch=0,
            grid=(B, n_tiles),
            in_specs=[
                pl.BlockSpec((1, 1, hop_length, tf_h), lambda b, j: (b, j, 0, 0)),
                pl.BlockSpec((2 * nfk_pad, n_fft), lambda b, j: (0, 0)),
                pl.BlockSpec((nm_pad, nfk_pad), lambda b, j: (0, 0)),
            ],
            out_specs=pl.BlockSpec((1, nm_pad, tf_eff), lambda b, j: (b, 0, j)),
        ),
        compiler_params=pltpu.CompilerParams(
            dimension_semantics=("parallel", "parallel")),
    )(seg_halo_t, basis_b, fb_b)

    # un-pad; cast back to f32 fused into this unavoidable slice
    mel = out[:, :n_mel_channels, :n_frames].astype(jnp.float32)

    if need_nyq:
        # rare path (never for defaults): add back the dropped Nyquist bin
        idx = (jnp.arange(n_frames)[:, None] * hop_length
               + jnp.arange(n_fft)[None, :])
        fr = x_f32[:, idx]                            # (B, n_frames, n_fft)
        coef = jnp.asarray(window * cos_np[:, -1], jnp.float32)
        nyq = jnp.abs(fr @ coef)                      # (B, n_frames)
        mel = mel + (nyq[:, None, :]
                     * jnp.asarray(nyq_weight, jnp.float32)[None, :, None])

    if normalize:
        mel = mel / jnp.max(mel)
        mel = 2.0 * jnp.power(mel, 0.25) - 1.0
    if normalize_log:
        mel = jnp.log(jnp.clip(mel, 1e-5))            # fixed: no removed a_min kwarg

    return mel.reshape(lead + (n_mel_channels, n_frames))


# ---------------------------- reference (JAX) --------------------------------

def _reference(waveform, n_fft, hop_length, win_length, sample_rate, n_mels):
    padding = (n_fft - hop_length) // 2
    x = jnp.pad(waveform.astype(jnp.float32),
                ((0, 0), (padding, padding)), mode="reflect")
    n_frames = (x.shape[1] - n_fft) // hop_length + 1
    idx = (jnp.arange(n_frames)[:, None] * hop_length
           + jnp.arange(n_fft)[None, :])
    frames = x[:, idx] * jnp.asarray(_make_window(n_fft, win_length), jnp.float32)
    spec = jnp.abs(jnp.fft.rfft(frames, n=n_fft, axis=-1))  # (B, n_frames, n_freq)
    fb = jnp.asarray(_melscale_fbanks(n_fft // 2 + 1, 0.0, sample_rate / 2.0,
                                      n_mels, sample_rate), jnp.float32)
    return jnp.einsum("btf,fm->bmt", spec, fb)


# ----------------------------------- main ------------------------------------

if __name__ == "__main__":
    n_fft, hop, win, sr, n_mels = 512, 160, 400, 16000, 80
    key = jax.random.PRNGKey(0)

    # 1) small input, single-tile path (module defaults)
    B, T = 2, 1600
    waveform = jax.random.normal(key, (B, T), dtype=jnp.float32)
    mel = jax.block_until_ready(
        mel_spectrogram(waveform, n_fft=n_fft, hop_length=hop, win_length=win,
                        sample_rate=sr, n_mel_channels=n_mels))
    ref = jax.block_until_ready(_reference(waveform, n_fft, hop, win, sr, n_mels))
    assert mel.shape == ref.shape, (mel.shape, ref.shape)
    # tolerance widened for bf16 MXU operands (f32 accumulate)
    np.testing.assert_allclose(np.asarray(mel), np.asarray(ref),
                               rtol=5e-2, atol=1e-1)

    # 2) longer single-batch input, multi-tile (halo-gather + forced 2-tile) path
    B2, T2 = 1, 48000
    waveform2 = jax.random.normal(jax.random.PRNGKey(1), (B2, T2), dtype=jnp.float32)
    mel2 = jax.block_until_ready(
        mel_spectrogram(waveform2, n_fft=n_fft, hop_length=hop, win_length=win,
                        sample_rate=sr, n_mel_channels=n_mels))
    ref2 = jax.block_until_ready(_reference(waveform2, n_fft, hop, win, sr, n_mels))
    assert mel2.shape == ref2.shape, (mel2.shape, ref2.shape)
    np.testing.assert_allclose(np.asarray(mel2), np.asarray(ref2),
                               rtol=5e-2, atol=1e-1)

    # 3) normalize_log branch (exercises the fixed jnp.clip call)
    mel3 = jax.block_until_ready(
        mel_spectrogram(waveform, n_fft=n_fft, hop_length=hop, win_length=win,
                        sample_rate=sr, n_mel_channels=n_mels, normalize_log=True))
    assert np.all(np.isfinite(np.asarray(mel3)))

    print("KERNEL_OK")
</pallas_src>

<mosaic_0001>
module attributes {stable_mosaic.version = 11 : i64} {
  func.func @_mel_kernel(%arg0: i32, %arg1: i32, %arg2: memref<1x1x160x19xbf16, #tpu.memory_space<vmem>>, %arg3: memref<512x512xbf16, #tpu.memory_space<vmem>>, %arg4: memref<128x256xbf16, #tpu.memory_space<vmem>>, %arg5: memref<1x128x16xbf16, #tpu.memory_space<vmem>>) attributes {dimension_semantics = [#tpu.dimension_semantics<parallel>, #tpu.dimension_semantics<parallel>], iteration_bounds = array<i64: 2, 1>, scalar_prefetch = 0 : i64, scratch_operands = 0 : i64, tpu.core_type = #tpu.core_type<tc>, window_params = [{transform_indices = @transform_0, window_bounds = array<i64: 1, 1, 160, 19>}, {pipeline_mode = #tpu.pipeline_mode<synchronous>, transform_indices = @transform_1, window_bounds = array<i64: 512, 512>}, {pipeline_mode = #tpu.pipeline_mode<synchronous>, transform_indices = @transform_2, window_bounds = array<i64: 128, 256>}, {transform_indices = @transform_3, window_bounds = array<i64: 1, 128, 16>}]} {
    %c0 = arith.constant 0 : index
    %c0_0 = arith.constant 0 : index
    %c0_1 = arith.constant 0 : index
    %c0_2 = arith.constant 0 : index
    %0 = vector.load %arg2[%c0, %c0_0, %c0_1, %c0_2] : memref<1x1x160x19xbf16, #tpu.memory_space<vmem>>, vector<1x1x160x19xbf16>
    %1 = vector.shape_cast %0 : vector<1x1x160x19xbf16> to vector<160x19xbf16>
    %2 = vector.extract_strided_slice %1 {offsets = [0, 0], sizes = [160, 16], strides = [1, 1]} : vector<160x19xbf16> to vector<160x16xbf16>
    %3 = vector.extract_strided_slice %1 {offsets = [0, 1], sizes = [160, 16], strides = [1, 1]} : vector<160x19xbf16> to vector<160x16xbf16>
    %4 = vector.extract_strided_slice %1 {offsets = [0, 2], sizes = [160, 16], strides = [1, 1]} : vector<160x19xbf16> to vector<160x16xbf16>
    %5 = vector.extract_strided_slice %1 {offsets = [0, 3], sizes = [32, 16], strides = [1, 1]} : vector<160x19xbf16> to vector<32x16xbf16>
    %6 = tpu.concatenate %2, %3, %4, %5 in 0 : vector<160x16xbf16>, vector<160x16xbf16>, vector<160x16xbf16>, vector<32x16xbf16> -> vector<512x16xbf16>
    %c0_3 = arith.constant 0 : index
    %c0_4 = arith.constant 0 : index
    %7 = vector.load %arg3[%c0_3, %c0_4] : memref<512x512xbf16, #tpu.memory_space<vmem>>, vector<512x512xbf16>
    %cst = arith.constant dense<0.000000e+00> : vector<512x16xf32>
    %8 = tpu.matmul %7, %6, %cst {dimension_numbers = #tpu.dot_dimension_numbers<[1], [0], [0], [1], [0, 0, 1, 1], [], []>} : vector<512x512xbf16>, vector<512x16xbf16>, vector<512x16xf32> -> vector<512x16xf32>
    %9 = vector.extract_strided_slice %8 {offsets = [0, 0], sizes = [256, 16], strides = [1, 1]} : vector<512x16xf32> to vector<256x16xf32>
    %10 = vector.extract_strided_slice %8 {offsets = [256, 0], sizes = [256, 16], strides = [1, 1]} : vector<512x16xf32> to vector<256x16xf32>
    %11 = arith.mulf %9, %9 : vector<256x16xf32>
    %12 = arith.mulf %10, %10 : vector<256x16xf32>
    %13 = arith.addf %11, %12 : vector<256x16xf32>
    %14 = arith.truncf %13 : vector<256x16xf32> to vector<256x16xbf16>
    %15 = math.sqrt %14 : vector<256x16xbf16>
    %c0_5 = arith.constant 0 : index
    %c0_6 = arith.constant 0 : index
    %16 = vector.load %arg4[%c0_5, %c0_6] : memref<128x256xbf16, #tpu.memory_space<vmem>>, vector<128x256xbf16>
    %cst_7 = arith.constant dense<0.000000e+00> : vector<128x16xf32>
    %17 = tpu.matmul %16, %15, %cst_7 {dimension_numbers = #tpu.dot_dimension_numbers<[1], [0], [0], [1], [0, 0, 1, 1], [], []>} : vector<128x256xbf16>, vector<256x16xbf16>, vector<128x16xf32> -> vector<128x16xf32>
    %18 = arith.truncf %17 : vector<128x16xf32> to vector<128x16xbf16>
    %c0_8 = arith.constant 0 : index
    %c0_9 = arith.constant 0 : index
    %c0_10 = arith.constant 0 : index
    %19 = vector.load %arg5[%c0_8, %c0_9, %c0_10] : memref<1x128x16xbf16, #tpu.memory_space<vmem>>, vector<1x128x16xbf16>
    %20 = vector.shape_cast %19 : vector<1x128x16xbf16> to vector<128x16xbf16>
    %21 = vector.shape_cast %18 : vector<128x16xbf16> to vector<1x128x16xbf16>
    tpu.vector_store %arg5[%c0_8, %c0_9, %c0_10], %21 {strides = array<i32>} : memref<1x128x16xbf16, #tpu.memory_space<vmem>>, vector<1x128x16xbf16>,
    return
  }
  func.func @transform_0(%arg0: i32, %arg1: i32) -> (i32, i32, i32, i32) {
    %c0_i32 = arith.constant 0 : i32
    %c0_i32_0 = arith.constant 0 : i32
    %c0_i32_1 = arith.constant 0 : i32
    return %arg0, %arg1, %c0_i32, %c0_i32_0 : i32, i32, i32, i32
  }
  func.func @transform_1(%arg0: i32, %arg1: i32) -> (i32, i32) {
    %c0_i32 = arith.constant 0 : i32
    %c0_i32_0 = arith.constant 0 : i32
    %c0_i32_1 = arith.constant 0 : i32
    return %c0_i32, %c0_i32_0 : i32, i32
  }
  func.func @transform_2(%arg0: i32, %arg1: i32) -> (i32, i32) {
    %c0_i32 = arith.constant 0 : i32
    %c0_i32_0 = arith.constant 0 : i32
    %c0_i32_1 = arith.constant 0 : i32
    return %c0_i32, %c0_i32_0 : i32, i32
  }
  func.func @transform_3(%arg0: i32, %arg1: i32) -> (i32, i32, i32) {
    %c0_i32 = arith.constant 0 : i32
    %c0_i32_0 = arith.constant 0 : i32
    return %arg0, %c0_i32, %arg1 : i32, i32, i32
  }
}

</mosaic_0001>

<llo_original>
// kernel: tpu_custom_call.1
$region0: #{tpu_custom_call.1}
  #allocation0 [shape = 'u32[]', space=smem, size = 0x4, offset = 0x4, fixed_abs, tag = 'smem constant byte address 0x4 - core index']
  #allocation1 [shape = 'u32[144,128]{1,0:T(1,128)}', space=vmem, size = 0x12000, scoped, tag = 'internal scratch']
  %s0 = inlined_call_operand.vmem [shape: bf16[2,1,160,19], index: 0, kind: input, shape index: {}]
  %s1 = inlined_call_operand.hbm [shape: bf16[512,512], index: 1, kind: input, shape index: {}]
  %s2 = inlined_call_operand.vmem [shape: bf16[128,256], index: 2, kind: input, shape index: {}]
  %s3 = inlined_call_operand.vmem [shape: bf16[2,128,16], index: 3, kind: output, shape index: {}]
  %s4 = sld [smem:[#allocation0]]
  $region49: #{tpu_custom_call.1} parent=0
    _
  %s6 = ssub.s32 1, %s4
  %s7 = scalar_select 0, %s6, %s4
  $region1: #{tpu_custom_call.1} parent=0
    #allocation2 [shape = 'u8[524288]{0}', space=vmem, size = 0x80000, scoped, tag = 'input window, operand 1, single buffered']
    #allocation3 [shape = 's32[2]{0}', space=sflag, size = 0x8, scoped, tag = 'scoped memory for tpu_custom_call.1']
    %8 = vsyncpa [#allocation3], 0
    loop: start=0, step=1, limit=4
    $region2: #{tpu_custom_call.1} parent=1 // loop_pre_header
      _
    $region3: #{tpu_custom_call.1} parent=1 // loop_header
      %s10 = sphi 0, %s14
      %p11 = scmp.ge.s32.totalorder %s10, 4
      %s17 = sphi 0, %s29
      %s18 = sphi 0, %s25
      %s19 = sphi 0, %s17
      %s20 = sphi 0, %s18
      %s21 = sphi 0, %s19
      %s22 = sphi 0, %s20
      %s34 = sphi 0, %s36
      %s37 = sphi 0, %s34
      %s38 = sphi 0, %s37
      %s54 = sphi 0, %s38
      %s58 = sphi 0, %s58
      %s60 = sphi 0, %s58
      %s61 = sphi 0, %s60
      %s75 = sphi 0, %s61
      %s79 = sphi 0, %s79
      %s81 = sphi 0, %s79
      %s82 = sphi 0, %s81
      %s96 = sphi 0, %s82
      %s104 = sphi 0, %s106
      %s107 = sphi 0, %s104
      %s108 = sphi 0, %s107
      %s124 = sphi 0, %s108
    $region4: #{tpu_custom_call.1} parent=1 // loop_header_branch
      %13 = sbr.rel (%p11) target = $region8
    $region5: #{tpu_custom_call.1} parent=1 // loop_body
      %s15 = ssub.s32 %s10, 1
      %s16 = ssub.s32 %s10, 2
      %s23 = sadd.s32 1, %s18
      %p24 = scmp.ge.s32.totalorder %s23, 1
      %s25 = scalar_select %p24, 0, %s23
      %s26 = sadd.s32 1, %s17
      %s27 = scalar_select %p24, %s26, %s17
      %p28 = scmp.ge.s32.totalorder %s27, 2
      %s29 = scalar_select %p28, 0, %s27
      %s30 = ssub.s32 %s17, %s29
      %s31 = ssub.s32 %s18, %s25
      %s32 = sor.u32 %s30, %s31
      %p33 = scmp.eq.s32.totalorder %s32, 0
      %s35 = sadd.s32 %s34, 1
      %s36 = scalar_select %p33, %s34, %s35
      %p39 = pneg %p33
      %p40 = scmp.eq.s32.totalorder %s10, 1
      %p41 = por %p39, %p40
      %p42 = scmp.ne.s32.totalorder %s34, %s37
      %p43 = scmp.eq.s32.totalorder %s10, 0
      %p44 = por %p42, %p43
      %p45 = scmp.ne.s32.totalorder %s34, %s37
      %p46 = scmp.eq.s32.totalorder %s15, 1
      %p47 = por %p45, %p46
      %p48 = scmp.ne.s32.totalorder %s37, %s38
      %p49 = scmp.eq.s32.totalorder %s15, 0
      %p50 = por %p48, %p49
      %p51 = scmp.ne.s32.totalorder %s37, %s38
      %p52 = scmp.eq.s32.totalorder %s16, 1
      %p53 = por %p51, %p52
      %p55 = scmp.ne.s32.totalorder %s38, %s54
      %p56 = scmp.eq.s32.totalorder %s16, 0
      %p57 = por %p55, %p56
      %s59 = sadd.s32 %s58, 1
      %p62 = scmp.eq.s32.totalorder %s10, 1
      %p63 = scmp.ne.s32.totalorder %s58, %s60
      %p64 = scmp.eq.s32.totalorder %s10, 0
      %p65 = por %p63, %p64
      %p66 = scmp.ne.s32.totalorder %s58, %s60
      %p67 = scmp.eq.s32.totalorder %s15, 1
      %p68 = por %p66, %p67
      %p69 = scmp.ne.s32.totalorder %s60, %s61
      %p70 = scmp.eq.s32.totalorder %s15, 0
      %p71 = por %p69, %p70
      %p72 = scmp.ne.s32.totalorder %s60, %s61
      %p73 = scmp.eq.s32.totalorder %s16, 1
      %p74 = por %p72, %p73
      %p76 = scmp.ne.s32.totalorder %s61, %s75
      %p77 = scmp.eq.s32.totalorder %s16, 0
      %p78 = por %p76, %p77
      %s80 = sadd.s32 %s79, 1
      %p83 = scmp.eq.s32.totalorder %s10, 1
      %p84 = scmp.ne.s32.totalorder %s79, %s81
      %p85 = scmp.eq.s32.totalorder %s10, 0
      %p86 = por %p84, %p85
      %p87 = scmp.ne.s32.totalorder %s79, %s81
      %p88 = scmp.eq.s32.totalorder %s15, 1
      %p89 = por %p87, %p88
      %p90 = scmp.ne.s32.totalorder %s81, %s82
      %p91 = scmp.eq.s32.totalorder %s15, 0
      %p92 = por %p90, %p91
      %p93 = scmp.ne.s32.totalorder %s81, %s82
      %p94 = scmp.eq.s32.totalorder %s16, 1
      %p95 = por %p93, %p94
      %p97 = scmp.ne.s32.totalorder %s82, %s96
      %p98 = scmp.eq.s32.totalorder %s16, 0
      %p99 = por %p97, %p98
      %s100 = ssub.s32 %s17, %s29
      %s101 = ssub.s32 %s18, %s25
      %s102 = sor.u32 %s100, %s101
      %p103 = scmp.eq.s32.totalorder %s102, 0
      %s105 = sadd.s32 %s104, 1
      %s106 = scalar_select %p103, %s104, %s105
      %p109 = pneg %p103
      %p110 = scmp.eq.s32.totalorder %s10, 1
      %p111 = por %p109, %p110
      %p112 = scmp.ne.s32.totalorder %s104, %s107
      %p113 = scmp.eq.s32.totalorder %s10, 0
      %p114 = por %p112, %p113
      %p115 = scmp.ne.s32.totalorder %s104, %s107
      %p116 = scmp.eq.s32.totalorder %s15, 1
      %p117 = por %p115, %p116
      %p118 = scmp.ne.s32.totalorder %s107, %s108
      %p119 = scmp.eq.s32.totalorder %s15, 0
      %p120 = por %p118, %p119
      %p121 = scmp.ne.s32.totalorder %s107, %s108
      %p122 = scmp.eq.s32.totalorder %s16, 1
      %p123 = por %p121, %p122
      %p125 = scmp.ne.s32.totalorder %s108, %s124
      %p126 = scmp.eq.s32.totalorder %s16, 0
      %p127 = por %p125, %p126
      %p128 = scmp.le.s32.totalorder 1, %s10
      %p129 = scmp.lt.s32.totalorder %s10, 3
      %p130 = pnand %p128, %p129
      %p131 = pneg %p130
      // Predicated region
      $region9: #{tpu_custom_call.1} parent=5 // pred_check
        _
      $region10: #{tpu_custom_call.1} parent=5 // pred_check_branch
        %133 = sbr.rel (%p130) target = $region12
      $region11: #{tpu_custom_call.1} parent=5 // pred_region
        %s134 = ssub.s32 %s10, 1
        // Predicated region
        $region13: #{tpu_custom_call.1} parent=11 // pred_check
          %p135 = pneg %p71
        $region14: #{tpu_custom_call.1} parent=11 // pred_check_branch
          %137 = sbr.rel (%p135) target = $region16
        $region15: #{tpu_custom_call.1} parent=11 // pred_region
          %s139 = ssub.s32 16384, 16384
          %140 = vsyncadd [#allocation3], %s139
          %s141 = sshll.u32 [#allocation2], 4
          %s142 = int_to_ptr.vmem [resolvable:$true] %s141
          %147 = dma.hbm_to_vmem [thread:$0]  %s1, 16384, %s142, [#allocation3], 256, 256, 16
        $region16: #{tpu_custom_call.1} parent=11 // pred_fallthru
          _
        // Predicated region
        $region17: #{tpu_custom_call.1} parent=11 // pred_check
          %p148 = pneg %p92
        $region18: #{tpu_custom_call.1} parent=11 // pred_check_branch
          %150 = sbr.rel (%p148) target = $region20
        $region19: #{tpu_custom_call.1} parent=11 // pred_region
          _
        $region20: #{tpu_custom_call.1} parent=11 // pred_fallthru
          _
      $region12: #{tpu_custom_call.1} parent=5 // pred_fallthru
        _
      %p151 = scmp.lt.s32.totalorder %s10, 2
      // Predicated region
      $region21: #{tpu_custom_call.1} parent=5 // pred_check
        %p152 = pneg %p151
      $region22: #{tpu_custom_call.1} parent=5 // pred_check_branch
        %154 = sbr.rel (%p152) target = $region24
      $region23: #{tpu_custom_call.1} parent=5 // pred_region
        // Predicated region
        $region25: #{tpu_custom_call.1} parent=23 // pred_check
          %p155 = pneg %p44
        $region26: #{tpu_custom_call.1} parent=23 // pred_check_branch
          %157 = sbr.rel (%p155) target = $region28
        $region27: #{tpu_custom_call.1} parent=23 // pred_region
          %p158 = scmp.lt.s32.totalorder %s17, 1
          %s159 = scalar_select %p158, %s17, 1
          %p160 = scmp.lt.s32.totalorder %s18, 0
          %s161 = scalar_select %p160, %s18, 0
          %s162 = smul.addr %s161, 20
          %s163 = smul.addr %s159, 20
          %s164 = sadd.s32 %s162, %s163
          %s165 = smul.addr %s164, 4
          %s166 = scalar_lea.vmem %s0, %s165
        $region28: #{tpu_custom_call.1} parent=23 // pred_fallthru
          _
      $region24: #{tpu_custom_call.1} parent=5 // pred_fallthru
        _
      %p167 = scmp.le.s32.totalorder 1, %s10
      %p168 = scmp.lt.s32.totalorder %s10, 3
      %p169 = pnand %p167, %p168
      %p170 = pneg %p169
      // Predicated region
      $region29: #{tpu_custom_call.1} parent=5 // pred_check
        _
      $region30: #{tpu_custom_call.1} parent=5 // pred_check_branch
        %172 = sbr.rel (%p169) target = $region32
      $region31: #{tpu_custom_call.1} parent=5 // pred_region
        %s173 = ssub.s32 %s10, 1
        // Predicated region
        $region33: #{tpu_custom_call.1} parent=31 // pred_check
          %p174 = pneg %p71
        $region34: #{tpu_custom_call.1} parent=31 // pred_check_branch
          %176 = sbr.rel (%p174) target = $region36
        $region35: #{tpu_custom_call.1} parent=31 // pred_region
          %177 = dma.done [#allocation3], 16384
        $region36: #{tpu_custom_call.1} parent=31 // pred_fallthru
          _
        %p178 = scmp.lt.s32.totalorder %s19, 1
        %s179 = scalar_select %p178, %s19, 1
        %p180 = scmp.lt.s32.totalorder %s20, 0
        %s181 = scalar_select %p180, %s20, 0
        %s182 = smul.addr %s181, 20
        %s183 = smul.addr %s179, 20
        %s184 = sadd.s32 %s182, %s183
        %s185 = smul.addr %s184, 4
        %s186 = scalar_lea.vmem %s0, %s185
        %p187 = pneg %p50
        %p188 = pneg %p47
        %p189 = pneg %p71
        %p190 = pneg %p68
        %p191 = pneg %p92
        %p192 = pneg %p89
        %p193 = pneg %p120
        %p194 = pneg %p117
        %p195 = scmp.lt.s32.totalorder %s19, 1
        %s196 = scalar_select %p195, %s19, 1
        %p197 = scmp.lt.s32.totalorder %s20, 0
        %s198 = scalar_select %p197, %s20, 0
        %s199 = smul.addr %s196, 16
        %s200 = sadd.s32 %s198, %s199
        %s201 = smul.addr %s200, 4
        %s202 = scalar_lea.vmem %s3, %s201
        %p203 = scmp.lt.s32.totalorder %s19, 1
        %s204 = scalar_select %p203, %s19, 1
        %p205 = scmp.lt.s32.totalorder %s20, 0
        %s206 = scalar_select %p205, %s20, 0
        %s207 = smul.addr %s206, 20
        %s208 = smul.addr %s204, 20
        %s209 = sadd.s32 %s207, %s208
        %s210 = smul.addr %s209, 4
        %s211 = scalar_lea.vmem %s0, %s210
        %p212 = scmp.lt.s32.totalorder %s19, 1
        %s213 = scalar_select %p212, %s19, 1
        %p214 = scmp.lt.s32.totalorder %s20, 0
        %s215 = scalar_select %p214, %s20, 0
        %s216 = smul.addr %s213, 16
        %s217 = sadd.s32 %s215, %s216
        %s218 = smul.addr %s217, 4
        %s219 = scalar_lea.vmem %s3, %s218
        %v221 = vld [vmem:[%s211] sm:$0xf]
        %v222 = vld [vmem:[%s211 + $0x4] sm:$0xf]
        %v223 = vld [vmem:[%s211 + $0x8] sm:$0xf]
        %v224 = vld [vmem:[%s211 + $0xc] sm:$0xf]
        %v225 = vld [vmem:[%s211 + $0x10] sm:$0xf]
        %v226 = vld [vmem:[%s211 + $0x14] sm:$0xf]
        %v227 = vld [vmem:[%s211 + $0x18] sm:$0xf]
        %v228 = vld [vmem:[%s211 + $0x1c] sm:$0xf]
        %v229 = vld [vmem:[%s211 + $0x20] sm:$0xf]
        %v230 = vld [vmem:[%s211 + $0x24] sm:$0xf]
        %v231 = vld [vmem:[%s211 + $0x28] sm:$0xf]
        %v232 = vld [vmem:[%s211 + $0x2c] sm:$0xf]
        %v233 = vld [vmem:[%s211 + $0x30] sm:$0xf]
        %v234 = vld [vmem:[%s211 + $0x34] sm:$0xf]
        %v235 = vld [vmem:[%s211 + $0x38] sm:$0xf]
        %v236 = vld [vmem:[%s211 + $0x3c] sm:$0xf]
        %v237 = vld [vmem:[%s211 + $0x40] sm:$0xf]
        %v238 = vld [vmem:[%s211 + $0x44] sm:$0xf]
        %v239 = vld [vmem:[%s211 + $0x48] sm:$0xf]
        %v240 = vld [vmem:[%s211 + $0x4c] sm:$0xf]
        %v261 = vunpack.c.l.b16 %v221
        %v262 = vunpack.c.l.b16 %v222
        %v263 = vunpack.c.l.b16 %v223
        %v264 = vunpack.c.l.b16 %v224
        %v265 = vunpack.c.l.b16 %v225
        %v266 = vunpack.c.l.b16 %v226
        %v267 = vunpack.c.l.b16 %v227
        %v268 = vunpack.c.l.b16 %v228
        %v269 = vunpack.c.l.b16 %v229
        %v270 = vunpack.c.l.b16 %v230
        %v271 = vunpack.c.l.b16 %v231
        %v272 = vunpack.c.l.b16 %v232
        %v273 = vunpack.c.l.b16 %v233
        %v274 = vunpack.c.l.b16 %v234
        %v275 = vunpack.c.l.b16 %v235
        %v276 = vunpack.c.l.b16 %v236
        %v277 = vunpack.c.l.b16 %v237
        %v278 = vunpack.c.l.b16 %v238
        %v279 = vunpack.c.l.b16 %v239
        %v280 = vunpack.c.l.b16 %v240
        %v281 = vpack.c.b16 %v262, %v261
        %v282 = vpack.c.b16 %v264, %v263
        %v283 = vpack.c.b16 %v266, %v265
        %v284 = vpack.c.b16 %v268, %v267
        %v285 = vpack.c.b16 %v270, %v269
        %v286 = vpack.c.b16 %v272, %v271
        %v287 = vpack.c.b16 %v274, %v273
        %v288 = vpack.c.b16 %v276, %v275
        %v289 = vpack.c.b16 %v278, %v277
        %v290 = vpack.c.b16 %v280, %v279
        %301 = vrot.lane.b32.xlu0 %v281, 127
        %v302 = vpop.permute.xlu0 %301
        %303 = vrot.lane.b32.xlu0 %v282, 127
        %v304 = vpop.permute.xlu0 %303
        %305 = vrot.lane.b32.xlu0 %v283, 127
        %v306 = vpop.permute.xlu0 %305
        %307 = vrot.lane.b32.xlu0 %v284, 127
        %v308 = vpop.permute.xlu0 %307
        %309 = vrot.lane.b32.xlu0 %v285, 127
        %v310 = vpop.permute.xlu0 %309
        %311 = vrot.lane.b32.xlu0 %v286, 127
        %v312 = vpop.permute.xlu0 %311
        %313 = vrot.lane.b32.xlu0 %v287, 127
        %v314 = vpop.permute.xlu0 %313
        %315 = vrot.lane.b32.xlu0 %v288, 127
        %v316 = vpop.permute.xlu0 %315
        %317 = vrot.lane.b32.xlu0 %v289, 127
        %v318 = vpop.permute.xlu0 %317
        %319 = vrot.lane.b32.xlu0 %v290, 127
        %v320 = vpop.permute.xlu0 %319
        %331 = vrot.lane.b32.xlu0 %v281, 126
        %v332 = vpop.permute.xlu0 %331
        %333 = vrot.lane.b32.xlu0 %v282, 126
        %v334 = vpop.permute.xlu0 %333
        %335 = vrot.lane.b32.xlu0 %v283, 126
        %v336 = vpop.permute.xlu0 %335
        %337 = vrot.lane.b32.xlu0 %v284, 126
        %v338 = vpop.permute.xlu0 %337
        %339 = vrot.lane.b32.xlu0 %v285, 126
        %v340 = vpop.permute.xlu0 %339
        %341 = vrot.lane.b32.xlu0 %v286, 126
        %v342 = vpop.permute.xlu0 %341
        %343 = vrot.lane.b32.xlu0 %v287, 126
        %v344 = vpop.permute.xlu0 %343
        %345 = vrot.lane.b32.xlu0 %v288, 126
        %v346 = vpop.permute.xlu0 %345
        %347 = vrot.lane.b32.xlu0 %v289, 126
        %v348 = vpop.permute.xlu0 %347
        %349 = vrot.lane.b32.xlu0 %v290, 126
        %v350 = vpop.permute.xlu0 %349
        %361 = vrot.lane.b32.xlu0 %v281, 125
        %v362 = vpop.permute.xlu0 %361
        %363 = vrot.lane.b32.xlu0 %v282, 125
        %v364 = vpop.permute.xlu0 %363
        %v367 = vld [vmem:[#allocation2] sm:$0xff]
        %v368 = vld [vmem:[#allocation2 + $0x8] sm:$0xff]
        %v369 = vld [vmem:[#allocation2 + $0x10] sm:$0xff]
        %v370 = vld [vmem:[#allocation2 + $0x18] sm:$0xff]
        %v371 = vld [vmem:[#allocation2 + $0x20] sm:$0xff]
        %v372 = vld [vmem:[#allocation2 + $0x28] sm:$0xff]
        %v373 = vld [vmem:[#allocation2 + $0x30] sm:$0xff]
        %v374 = vld [vmem:[#allocation2 + $0x38] sm:$0xff]
        %v375 = vld [vmem:[#allocation2 + $0x40] sm:$0xff]
        %v376 = vld [vmem:[#allocation2 + $0x48] sm:$0xff]
        %v377 = vld [vmem:[#allocation2 + $0x50] sm:$0xff]
        %v378 = vld [vmem:[#allocation2 + $0x58] sm:$0xff]
        %v379 = vld [vmem:[#allocation2 + $0x60] sm:$0xff]
        %v380 = vld [vmem:[#allocation2 + $0x68] sm:$0xff]
        %v381 = vld [vmem:[#allocation2 + $0x70] sm:$0xff]
        %v382 = vld [vmem:[#allocation2 + $0x78] sm:$0xff]
        %v383 = vld [vmem:[#allocation2 + $0x80] sm:$0xff]
        %v384 = vld [vmem:[#allocation2 + $0x88] sm:$0xff]
        %v385 = vld [vmem:[#allocation2 + $0x90] sm:$0xff]
        %v386 = vld [vmem:[#allocation2 + $0x98] sm:$0xff]
        %v387 = vld [vmem:[#allocation2 + $0xa0] sm:$0xff]
        %v388 = vld [vmem:[#allocation2 + $0xa8] sm:$0xff]
        %v389 = vld [vmem:[#allocation2 + $0xb0] sm:$0xff]
        %v390 = vld [vmem:[#allocation2 + $0xb8] sm:$0xff]
        %v391 = vld [vmem:[#allocation2 + $0xc0] sm:$0xff]
        %v392 = vld [vmem:[#allocation2 + $0xc8] sm:$0xff]
        %v393 = vld [vmem:[#allocation2 + $0xd0] sm:$0xff]
        %v394 = vld [vmem:[#allocation2 + $0xd8] sm:$0xff]
        %v395 = vld [vmem:[#allocation2 + $0xe0] sm:$0xff]
        %v396 = vld [vmem:[#allocation2 + $0xe8] sm:$0xff]
        %v397 = vld [vmem:[#allocation2 + $0xf0] sm:$0xff]
        %v398 = vld [vmem:[#allocation2 + $0xf8] sm:$0xff]
        %v399 = vld [vmem:[#allocation2 + $0x100] sm:$0xff]
        %v400 = vld [vmem:[#allocation2 + $0x108] sm:$0xff]
        %v401 = vld [vmem:[#allocation2 + $0x110] sm:$0xff]
        %v402 = vld [vmem:[#allocation2 + $0x118] sm:$0xff]
        %v403 = vld [vmem:[#allocation2 + $0x120] sm:$0xff]
        %v404 = vld [vmem:[#allocation2 + $0x128] sm:$0xff]
        %v405 = vld [vmem:[#allocation2 + $0x130] sm:$0xff]
        %v406 = vld [vmem:[#allocation2 + $0x138] sm:$0xff]
        %v407 = vld [vmem:[#allocation2 + $0x140] sm:$0xff]
        %v408 = vld [vmem:[#allocation2 + $0x148] sm:$0xff]
        %v409 = vld [vmem:[#allocation2 + $0x150] sm:$0xff]
        %v410 = vld [vmem:[#allocation2 + $0x158] sm:$0xff]
        %v411 = vld [vmem:[#allocation2 + $0x160] sm:$0xff]
        %v412 = vld [vmem:[#allocation2 + $0x168] sm:$0xff]
        %v413 = vld [vmem:[#allocation2 + $0x170] sm:$0xff]
        %v414 = vld [vmem:[#allocation2 + $0x178] sm:$0xff]
        %v415 = vld [vmem:[#allocation2 + $0x180] sm:$0xff]
        %v416 = vld [vmem:[#allocation2 + $0x188] sm:$0xff]
        %v417 = vld [vmem:[#allocation2 + $0x190] sm:$0xff]
        %v418 = vld [vmem:[#allocation2 + $0x198] sm:$0xff]
        %v419 = vld [vmem:[#allocation2 + $0x1a0] sm:$0xff]
        %v420 = vld [vmem:[#allocation2 + $0x1a8] sm:$0xff]
        %v421 = vld [vmem:[#allocation2 + $0x1b0] sm:$0xff]
        %v422 = vld [vmem:[#allocation2 + $0x1b8] sm:$0xff]
        %v423 = vld [vmem:[#allocation2 + $0x1c0] sm:$0xff]
        %v424 = vld [vmem:[#allocation2 + $0x1c8] sm:$0xff]
        %v425 = vld [vmem:[#allocation2 + $0x1d0] sm:$0xff]
        %v426 = vld [vmem:[#allocation2 + $0x1d8] sm:$0xff]
        %v427 = vld [vmem:[#allocation2 + $0x1e0] sm:$0xff]
        %v428 = vld [vmem:[#allocation2 + $0x1e8] sm:$0xff]
        %v429 = vld [vmem:[#allocation2 + $0x1f0] sm:$0xff]
        %v430 = vld [vmem:[#allocation2 + $0x1f8] sm:$0xff]
        %v431 = vld [vmem:[#allocation2 + $0x200] sm:$0xff]
        %v432 = vld [vmem:[#allocation2 + $0x208] sm:$0xff]
        %v433 = vld [vmem:[#allocation2 + $0x210] sm:$0xff]
        %v434 = vld [vmem:[#allocation2 + $0x218] sm:$0xff]
        %v435 = vld [vmem:[#allocation2 + $0x220] sm:$0xff]
        %v436 = vld [vmem:[#allocation2 + $0x228] sm:$0xff]
        %v437 = vld [vmem:[#allocation2 + $0x230] sm:$0xff]
        %v438 = vld [vmem:[#allocation2 + $0x238] sm:$0xff]
        %v439 = vld [vmem:[#allocation2 + $0x240] sm:$0xff]
        %v440 = vld [vmem:[#allocation2 + $0x248] sm:$0xff]
        %v441 = vld [vmem:[#allocation2 + $0x250] sm:$0xff]
        %v442 = vld [vmem:[#allocation2 + $0x258] sm:$0xff]
        %v443 = vld [vmem:[#allocation2 + $0x260] sm:$0xff]
        %v444 = vld [vmem:[#allocation2 + $0x268] sm:$0xff]
        %v445 = vld [vmem:[#allocation2 + $0x270] sm:$0xff]
        %v446 = vld [vmem:[#allocation2 + $0x278] sm:$0xff]
        %v447 = vld [vmem:[#allocation2 + $0x280] sm:$0xff]
        %v448 = vld [vmem:[#allocation2 + $0x288] sm:$0xff]
        %v449 = vld [vmem:[#allocation2 + $0x290] sm:$0xff]
        %v450 = vld [vmem:[#allocation2 + $0x298] sm:$0xff]
        %v451 = vld [vmem:[#allocation2 + $0x2a0] sm:$0xff]
        %v452 = vld [vmem:[#allocation2 + $0x2a8] sm:$0xff]
        %v453 = vld [vmem:[#allocation2 + $0x2b0] sm:$0xff]
        %v454 = vld [vmem:[#allocation2 + $0x2b8] sm:$0xff]
        %v455 = vld [vmem:[#allocation2 + $0x2c0] sm:$0xff]
        %v456 = vld [vmem:[#allocation2 + $0x2c8] sm:$0xff]
        %v457 = vld [vmem:[#allocation2 + $0x2d0] sm:$0xff]
        %v458 = vld [vmem:[#allocation2 + $0x2d8] sm:$0xff]
        %v459 = vld [vmem:[#allocation2 + $0x2e0] sm:$0xff]
        %v460 = vld [vmem:[#allocation2 + $0x2e8] sm:$0xff]
        %v461 = vld [vmem:[#allocation2 + $0x2f0] sm:$0xff]
        %v462 = vld [vmem:[#allocation2 + $0x2f8] sm:$0xff]
        %v463 = vld [vmem:[#allocation2 + $0x300] sm:$0xff]
        %v464 = vld [vmem:[#allocation2 + $0x308] sm:$0xff]
        %v465 = vld [vmem:[#allocation2 + $0x310] sm:$0xff]
        %v466 = vld [vmem:[#allocation2 + $0x318] sm:$0xff]
        %v467 = vld [vmem:[#allocation2 + $0x320] sm:$0xff]
        %v468 = vld [vmem:[#allocation2 + $0x328] sm:$0xff]
        %v469 = vld [vmem:[#allocation2 + $0x330] sm:$0xff]
        %v470 = vld [vmem:[#allocation2 + $0x338] sm:$0xff]
        %v471 = vld [vmem:[#allocation2 + $0x340] sm:$0xff]
        %v472 = vld [vmem:[#allocation2 + $0x348] sm:$0xff]
        %v473 = vld [vmem:[#allocation2 + $0x350] sm:$0xff]
        %v474 = vld [vmem:[#allocation2 + $0x358] sm:$0xff]
        %v475 = vld [vmem:[#allocation2 + $0x360] sm:$0xff]
        %v476 = vld [vmem:[#allocation2 + $0x368] sm:$0xff]
        %v477 = vld [vmem:[#allocation2 + $0x370] sm:$0xff]
        %v478 = vld [vmem:[#allocation2 + $0x378] sm:$0xff]
        %v479 = vld [vmem:[#allocation2 + $0x380] sm:$0xff]
        %v480 = vld [vmem:[#allocation2 + $0x388] sm:$0xff]
        %v481 = vld [vmem:[#allocation2 + $0x390] sm:$0xff]
        %v482 = vld [vmem:[#allocation2 + $0x398] sm:$0xff]
        %v483 = vld [vmem:[#allocation2 + $0x3a0] sm:$0xff]
        %v484 = vld [vmem:[#allocation2 + $0x3a8] sm:$0xff]
        %v485 = vld [vmem:[#allocation2 + $0x3b0] sm:$0xff]
        %v486 = vld [vmem:[#allocation2 + $0x3b8] sm:$0xff]
        %v487 = vld [vmem:[#allocation2 + $0x3c0] sm:$0xff]
        %v488 = vld [vmem:[#allocation2 + $0x3c8] sm:$0xff]
        %v489 = vld [vmem:[#allocation2 + $0x3d0] sm:$0xff]
        %v490 = vld [vmem:[#allocation2 + $0x3d8] sm:$0xff]
        %v491 = vld [vmem:[#allocation2 + $0x3e0] sm:$0xff]
        %v492 = vld [vmem:[#allocation2 + $0x3e8] sm:$0xff]
        %v493 = vld [vmem:[#allocation2 + $0x3f0] sm:$0xff]
        %v494 = vld [vmem:[#allocation2 + $0x3f8] sm:$0xff]
        %v623 = vunpack.c.l.b16 %v367
        %v624 = vunpack.c.h.b16 %v367
        %v625 = vunpack.c.l.b16 %v368
        %v626 = vunpack.c.h.b16 %v368
        %v627 = vunpack.c.l.b16 %v369
        %v628 = vunpack.c.h.b16 %v369
        %v629 = vunpack.c.l.b16 %v370
        %v630 = vunpack.c.h.b16 %v370
        %v631 = vunpack.c.l.b16 %v371
        %v632 = vunpack.c.h.b16 %v371
        %v633 = vunpack.c.l.b16 %v372
        %v634 = vunpack.c.h.b16 %v372
        %v635 = vunpack.c.l.b16 %v373
        %v636 = vunpack.c.h.b16 %v373
        %v637 = vunpack.c.l.b16 %v374
        %v638 = vunpack.c.h.b16 %v374
        %v639 = vunpack.c.l.b16 %v375
        %v640 = vunpack.c.h.b16 %v375
        %v641 = vunpack.c.l.b16 %v376
        %v642 = vunpack.c.h.b16 %v376
        %v643 = vunpack.c.l.b16 %v377
        %v644 = vunpack.c.h.b16 %v377
        %v645 = vunpack.c.l.b16 %v378
        %v646 = vunpack.c.h.b16 %v378
        %v647 = vunpack.c.l.b16 %v379
        %v648 = vunpack.c.h.b16 %v379
        %v649 = vunpack.c.l.b16 %v380
        %v650 = vunpack.c.h.b16 %v380
        %v651 = vunpack.c.l.b16 %v381
        %v652 = vunpack.c.h.b16 %v381
        %v653 = vunpack.c.l.b16 %v382
        %v654 = vunpack.c.h.b16 %v382
        %v655 = vunpack.c.l.b16 %v383
        %v656 = vunpack.c.h.b16 %v383
        %v657 = vunpack.c.l.b16 %v384
        %v658 = vunpack.c.h.b16 %v384
        %v659 = vunpack.c.l.b16 %v385
        %v660 = vunpack.c.h.b16 %v385
        %v661 = vunpack.c.l.b16 %v386
        %v662 = vunpack.c.h.b16 %v386
        %v663 = vunpack.c.l.b16 %v387
        %v664 = vunpack.c.h.b16 %v387
        %v665 = vunpack.c.l.b16 %v388
        %v666 = vunpack.c.h.b16 %v388
        %v667 = vunpack.c.l.b16 %v389
        %v668 = vunpack.c.h.b16 %v389
        %v669 = vunpack.c.l.b16 %v390
        %v670 = vunpack.c.h.b16 %v390
        %v671 = vunpack.c.l.b16 %v391
        %v672 = vunpack.c.h.b16 %v391
        %v673 = vunpack.c.l.b16 %v392
        %v674 = vunpack.c.h.b16 %v392
        %v675 = vunpack.c.l.b16 %v393
        %v676 = vunpack.c.h.b16 %v393
        %v677 = vunpack.c.l.b16 %v394
        %v678 = vunpack.c.h.b16 %v394
        %v679 = vunpack.c.l.b16 %v395
        %v680 = vunpack.c.h.b16 %v395
        %v681 = vunpack.c.l.b16 %v396
        %v682 = vunpack.c.h.b16 %v396
        %v683 = vunpack.c.l.b16 %v397
        %v684 = vunpack.c.h.b16 %v397
        %v685 = vunpack.c.l.b16 %v398
        %v686 = vunpack.c.h.b16 %v398
        %v687 = vunpack.c.l.b16 %v399
        %v688 = vunpack.c.h.b16 %v399
        %v689 = vunpack.c.l.b16 %v400
        %v690 = vunpack.c.h.b16 %v400
        %v691 = vunpack.c.l.b16 %v401
        %v692 = vunpack.c.h.b16 %v401
        %v693 = vunpack.c.l.b16 %v402
        %v694 = vunpack.c.h.b16 %v402
        %v695 = vunpack.c.l.b16 %v403
        %v696 = vunpack.c.h.b16 %v403
        %v697 = vunpack.c.l.b16 %v404
        %v698 = vunpack.c.h.b16 %v404
        %v699 = vunpack.c.l.b16 %v405
        %v700 = vunpack.c.h.b16 %v405
        %v701 = vunpack.c.l.b16 %v406
        %v702 = vunpack.c.h.b16 %v406
        %v703 = vunpack.c.l.b16 %v407
        %v704 = vunpack.c.h.b16 %v407
        %v705 = vunpack.c.l.b16 %v408
        %v706 = vunpack.c.h.b16 %v408
        %v707 = vunpack.c.l.b16 %v409
        %v708 = vunpack.c.h.b16 %v409
        %v709 = vunpack.c.l.b16 %v410
        %v710 = vunpack.c.h.b16 %v410
        %v711 = vunpack.c.l.b16 %v411
        %v712 = vunpack.c.h.b16 %v411
        %v713 = vunpack.c.l.b16 %v412
        %v714 = vunpack.c.h.b16 %v412
        %v715 = vunpack.c.l.b16 %v413
        %v716 = vunpack.c.h.b16 %v413
        %v717 = vunpack.c.l.b16 %v414
        %v718 = vunpack.c.h.b16 %v414
        %v719 = vunpack.c.l.b16 %v415
        %v720 = vunpack.c.h.b16 %v415
        %v721 = vunpack.c.l.b16 %v416
        %v722 = vunpack.c.h.b16 %v416
        %v723 = vunpack.c.l.b16 %v417
        %v724 = vunpack.c.h.b16 %v417
        %v725 = vunpack.c.l.b16 %v418
        %v726 = vunpack.c.h.b16 %v418
        %v727 = vunpack.c.l.b16 %v419
        %v728 = vunpack.c.h.b16 %v419
        %v729 = vunpack.c.l.b16 %v420
        %v730 = vunpack.c.h.b16 %v420
        %v731 = vunpack.c.l.b16 %v421
        %v732 = vunpack.c.h.b16 %v421
        %v733 = vunpack.c.l.b16 %v422
        %v734 = vunpack.c.h.b16 %v422
        %v735 = vunpack.c.l.b16 %v423
        %v736 = vunpack.c.h.b16 %v423
        %v737 = vunpack.c.l.b16 %v424
        %v738 = vunpack.c.h.b16 %v424
        %v739 = vunpack.c.l.b16 %v425
        %v740 = vunpack.c.h.b16 %v425
        %v741 = vunpack.c.l.b16 %v426
        %v742 = vunpack.c.h.b16 %v426
        %v743 = vunpack.c.l.b16 %v427
        %v744 = vunpack.c.h.b16 %v427
        %v745 = vunpack.c.l.b16 %v428
        %v746 = vunpack.c.h.b16 %v428
        %v747 = vunpack.c.l.b16 %v429
        %v748 = vunpack.c.h.b16 %v429
        %v749 = vunpack.c.l.b16 %v430
        %v750 = vunpack.c.h.b16 %v430
        %v751 = vunpack.c.l.b16 %v431
        %v752 = vunpack.c.h.b16 %v431
        %v753 = vunpack.c.l.b16 %v432
        %v754 = vunpack.c.h.b16 %v432
        %v755 = vunpack.c.l.b16 %v433
        %v756 = vunpack.c.h.b16 %v433
        %v757 = vunpack.c.l.b16 %v434
        %v758 = vunpack.c.h.b16 %v434
        %v759 = vunpack.c.l.b16 %v435
        %v760 = vunpack.c.h.b16 %v435
        %v761 = vunpack.c.l.b16 %v436
        %v762 = vunpack.c.h.b16 %v436
        %v763 = vunpack.c.l.b16 %v437
        %v764 = vunpack.c.h.b16 %v437
        %v765 = vunpack.c.l.b16 %v438
        %v766 = vunpack.c.h.b16 %v438
        %v767 = vunpack.c.l.b16 %v439
        %v768 = vunpack.c.h.b16 %v439
        %v769 = vunpack.c.l.b16 %v440
        %v770 = vunpack.c.h.b16 %v440
        %v771 = vunpack.c.l.b16 %v441
        %v772 = vunpack.c.h.b16 %v441
        %v773 = vunpack.c.l.b16 %v442
        %v774 = vunpack.c.h.b16 %v442
        %v775 = vunpack.c.l.b16 %v443
        %v776 = vunpack.c.h.b16 %v443
        %v777 = vunpack.c.l.b16 %v444
        %v778 = vunpack.c.h.b16 %v444
        %v779 = vunpack.c.l.b16 %v445
        %v780 = vunpack.c.h.b16 %v445
        %v781 = vunpack.c.l.b16 %v446
        %v782 = vunpack.c.h.b16 %v446
        %v783 = vunpack.c.l.b16 %v447
        %v784 = vunpack.c.h.b16 %v447
        %v785 = vunpack.c.l.b16 %v448
        %v786 = vunpack.c.h.b16 %v448
        %v787 = vunpack.c.l.b16 %v449
        %v788 = vunpack.c.h.b16 %v449
        %v789 = vunpack.c.l.b16 %v450
        %v790 = vunpack.c.h.b16 %v450
        %v791 = vunpack.c.l.b16 %v451
        %v792 = vunpack.c.h.b16 %v451
        %v793 = vunpack.c.l.b16 %v452
        %v794 = vunpack.c.h.b16 %v452
        %v795 = vunpack.c.l.b16 %v453
        %v796 = vunpack.c.h.b16 %v453
        %v797 = vunpack.c.l.b16 %v454
        %v798 = vunpack.c.h.b16 %v454
        %v799 = vunpack.c.l.b16 %v455
        %v800 = vunpack.c.h.b16 %v455
        %v801 = vunpack.c.l.b16 %v456
        %v802 = vunpack.c.h.b16 %v456
        %v803 = vunpack.c.l.b16 %v457
        %v804 = vunpack.c.h.b16 %v457
        %v805 = vunpack.c.l.b16 %v458
        %v806 = vunpack.c.h.b16 %v458
        %v807 = vunpack.c.l.b16 %v459
        %v808 = vunpack.c.h.b16 %v459
        %v809 = vunpack.c.l.b16 %v460
        %v810 = vunpack.c.h.b16 %v460
        %v811 = vunpack.c.l.b16 %v461
        %v812 = vunpack.c.h.b16 %v461
        %v813 = vunpack.c.l.b16 %v462
        %v814 = vunpack.c.h.b16 %v462
        %v815 = vunpack.c.l.b16 %v463
        %v816 = vunpack.c.h.b16 %v463
        %v817 = vunpack.c.l.b16 %v464
        %v818 = vunpack.c.h.b16 %v464
        %v819 = vunpack.c.l.b16 %v465
        %v820 = vunpack.c.h.b16 %v465
        %v821 = vunpack.c.l.b16 %v466
        %v822 = vunpack.c.h.b16 %v466
        %v823 = vunpack.c.l.b16 %v467
        %v824 = vunpack.c.h.b16 %v467
        %v825 = vunpack.c.l.b16 %v468
        %v826 = vunpack.c.h.b16 %v468
        %v827 = vunpack.c.l.b16 %v469
        %v828 = vunpack.c.h.b16 %v469
        %v829 = vunpack.c.l.b16 %v470
        %v830 = vunpack.c.h.b16 %v470
        %v831 = vunpack.c.l.b16 %v471
        %v832 = vunpack.c.h.b16 %v471
        %v833 = vunpack.c.l.b16 %v472
        %v834 = vunpack.c.h.b16 %v472
        %v835 = vunpack.c.l.b16 %v473
        %v836 = vunpack.c.h.b16 %v473
        %v837 = vunpack.c.l.b16 %v474
        %v838 = vunpack.c.h.b16 %v474
        %v839 = vunpack.c.l.b16 %v475
        %v840 = vunpack.c.h.b16 %v475
        %v841 = vunpack.c.l.b16 %v476
        %v842 = vunpack.c.h.b16 %v476
        %v843 = vunpack.c.l.b16 %v477
        %v844 = vunpack.c.h.b16 %v477
        %v845 = vunpack.c.l.b16 %v478
        %v846 = vunpack.c.h.b16 %v478
        %v847 = vunpack.c.l.b16 %v479
        %v848 = vunpack.c.h.b16 %v479
        %v849 = vunpack.c.l.b16 %v480
        %v850 = vunpack.c.h.b16 %v480
        %v851 = vunpack.c.l.b16 %v481
        %v852 = vunpack.c.h.b16 %v481
        %v853 = vunpack.c.l.b16 %v482
        %v854 = vunpack.c.h.b16 %v482
        %v855 = vunpack.c.l.b16 %v483
        %v856 = vunpack.c.h.b16 %v483
        %v857 = vunpack.c.l.b16 %v484
        %v858 = vunpack.c.h.b16 %v484
        %v859 = vunpack.c.l.b16 %v485
        %v860 = vunpack.c.h.b16 %v485
        %v861 = vunpack.c.l.b16 %v486
        %v862 = vunpack.c.h.b16 %v486
        %v863 = vunpack.c.l.b16 %v487
        %v864 = vunpack.c.h.b16 %v487
        %v865 = vunpack.c.l.b16 %v488
        %v866 = vunpack.c.h.b16 %v488
        %v867 = vunpack.c.l.b16 %v489
        %v868 = vunpack.c.h.b16 %v489
        %v869 = vunpack.c.l.b16 %v490
        %v870 = vunpack.c.h.b16 %v490
        %v871 = vunpack.c.l.b16 %v491
        %v872 = vunpack.c.h.b16 %v491
        %v873 = vunpack.c.l.b16 %v492
        %v874 = vunpack.c.h.b16 %v492
        %v875 = vunpack.c.l.b16 %v493
        %v876 = vunpack.c.h.b16 %v493
        %v877 = vunpack.c.l.b16 %v494
        %v878 = vunpack.c.h.b16 %v494
        %v879 = vpack.c.b16 %v627, %v623
        %v880 = vpack.c.b16 %v628, %v624
        %v881 = vpack.c.b16 %v629, %v625
        %v882 = vpack.c.b16 %v630, %v626
        %v883 = vpack.c.b16 %v635, %v631
        %v884 = vpack.c.b16 %v636, %v632
        %v885 = vpack.c.b16 %v637, %v633
        %v886 = vpack.c.b16 %v638, %v634
        %v887 = vpack.c.b16 %v643, %v639
        %v888 = vpack.c.b16 %v644, %v640
        %v889 = vpack.c.b16 %v645, %v641
        %v890 = vpack.c.b16 %v646, %v642
        %v891 = vpack.c.b16 %v651, %v647
        %v892 = vpack.c.b16 %v652, %v648
        %v893 = vpack.c.b16 %v653, %v649
        %v894 = vpack.c.b16 %v654, %v650
        %v895 = vpack.c.b16 %v659, %v655
        %v896 = vpack.c.b16 %v660, %v656
        %v897 = vpack.c.b16 %v661, %v657
        %v898 = vpack.c.b16 %v662, %v658
        %v899 = vpack.c.b16 %v667, %v663
        %v900 = vpack.c.b16 %v668, %v664
        %v901 = vpack.c.b16 %v669, %v665
        %v902 = vpack.c.b16 %v670, %v666
        %v903 = vpack.c.b16 %v675, %v671
        %v904 = vpack.c.b16 %v676, %v672
        %v905 = vpack.c.b16 %v677, %v673
        %v906 = vpack.c.b16 %v678, %v674
        %v907 = vpack.c.b16 %v683, %v679
        %v908 = vpack.c.b16 %v684, %v680
        %v909 = vpack.c.b16 %v685, %v681
        %v910 = vpack.c.b16 %v686, %v682
        %v911 = vpack.c.b16 %v691, %v687
        %v912 = vpack.c.b16 %v692, %v688
        %v913 = vpack.c.b16 %v693, %v689
        %v914 = vpack.c.b16 %v694, %v690
        %v915 = vpack.c.b16 %v699, %v695
        %v916 = vpack.c.b16 %v700, %v696
        %v917 = vpack.c.b16 %v701, %v697
        %v918 = vpack.c.b16 %v702, %v698
        %v919 = vpack.c.b16 %v707, %v703
        %v920 = vpack.c.b16 %v708, %v704
        %v921 = vpack.c.b16 %v709, %v705
        %v922 = vpack.c.b16 %v710, %v706
        %v923 = vpack.c.b16 %v715, %v711
        %v924 = vpack.c.b16 %v716, %v712
        %v925 = vpack.c.b16 %v717, %v713
        %v926 = vpack.c.b16 %v718, %v714
        %v927 = vpack.c.b16 %v723, %v719
        %v928 = vpack.c.b16 %v724, %v720
        %v929 = vpack.c.b16 %v725, %v721
        %v930 = vpack.c.b16 %v726, %v722
        %v931 = vpack.c.b16 %v731, %v727
        %v932 = vpack.c.b16 %v732, %v728
        %v933 = vpack.c.b16 %v733, %v729
        %v934 = vpack.c.b16 %v734, %v730
        %v935 = vpack.c.b16 %v739, %v735
        %v936 = vpack.c.b16 %v740, %v736
        %v937 = vpack.c.b16 %v741, %v737
        %v938 = vpack.c.b16 %v742, %v738
        %v939 = vpack.c.b16 %v747, %v743
        %v940 = vpack.c.b16 %v748, %v744
        %v941 = vpack.c.b16 %v749, %v745
        %v942 = vpack.c.b16 %v750, %v746
        %v943 = vpack.c.b16 %v755, %v751
        %v944 = vpack.c.b16 %v756, %v752
        %v945 = vpack.c.b16 %v757, %v753
        %v946 = vpack.c.b16 %v758, %v754
        %v947 = vpack.c.b16 %v763, %v759
        %v948 = vpack.c.b16 %v764, %v760
        %v949 = vpack.c.b16 %v765, %v761
        %v950 = vpack.c.b16 %v766, %v762
        %v951 = vpack.c.b16 %v771, %v767
        %v952 = vpack.c.b16 %v772, %v768
        %v953 = vpack.c.b16 %v773, %v769
        %v954 = vpack.c.b16 %v774, %v770
        %v955 = vpack.c.b16 %v779, %v775
        %v956 = vpack.c.b16 %v780, %v776
        %v957 = vpack.c.b16 %v781, %v777
        %v958 = vpack.c.b16 %v782, %v778
        %v959 = vpack.c.b16 %v787, %v783
        %v960 = vpack.c.b16 %v788, %v784
        %v961 = vpack.c.b16 %v789, %v785
        %v962 = vpack.c.b16 %v790, %v786
        %v963 = vpack.c.b16 %v795, %v791
        %v964 = vpack.c.b16 %v796, %v792
        %v965 = vpack.c.b16 %v797, %v793
        %v966 = vpack.c.b16 %v798, %v794
        %v967 = vpack.c.b16 %v803, %v799
        %v968 = vpack.c.b16 %v804, %v800
        %v969 = vpack.c.b16 %v805, %v801
        %v970 = vpack.c.b16 %v806, %v802
        %v971 = vpack.c.b16 %v811, %v807
        %v972 = vpack.c.b16 %v812, %v808
        %v973 = vpack.c.b16 %v813, %v809
        %v974 = vpack.c.b16 %v814, %v810
        %v975 = vpack.c.b16 %v819, %v815
        %v976 = vpack.c.b16 %v820, %v816
        %v977 = vpack.c.b16 %v821, %v817
        %v978 = vpack.c.b16 %v822, %v818
        %v979 = vpack.c.b16 %v827, %v823
        %v980 = vpack.c.b16 %v828, %v824
        %v981 = vpack.c.b16 %v829, %v825
        %v982 = vpack.c.b16 %v830, %v826
        %v983 = vpack.c.b16 %v835, %v831
        %v984 = vpack.c.b16 %v836, %v832
        %v985 = vpack.c.b16 %v837, %v833
        %v986 = vpack.c.b16 %v838, %v834
        %v987 = vpack.c.b16 %v843, %v839
        %v988 = vpack.c.b16 %v844, %v840
        %v989 = vpack.c.b16 %v845, %v841
        %v990 = vpack.c.b16 %v846, %v842
        %v991 = vpack.c.b16 %v851, %v847
        %v992 = vpack.c.b16 %v852, %v848
        %v993 = vpack.c.b16 %v853, %v849
        %v994 = vpack.c.b16 %v854, %v850
        %v995 = vpack.c.b16 %v859, %v855
        %v996 = vpack.c.b16 %v860, %v856
        %v997 = vpack.c.b16 %v861, %v857
        %v998 = vpack.c.b16 %v862, %v858
        %v999 = vpack.c.b16 %v867, %v863
        %v1000 = vpack.c.b16 %v868, %v864
        %v1001 = vpack.c.b16 %v869, %v865
        %v1002 = vpack.c.b16 %v870, %v866
        %v1003 = vpack.c.b16 %v875, %v871
        %v1004 = vpack.c.b16 %v876, %v872
        %v1005 = vpack.c.b16 %v877, %v873
        %v1006 = vpack.c.b16 %v878, %v874
        %1135 = vmatprep.subr.bf16.mxu0 0
        %1136 = vmatpush1.bf16.msra.mxu0 %v281
        %1137 = vmatprep.subr.bf16.mxu0 0
        %1138 = vmatpush1.bf16.msra.mxu0 %v282
        %1139 = vmatprep.subr.bf16.mxu0 0
        %1140 = vmatpush1.bf16.msra.mxu0 %v283
        %1141 = vmatprep.subr.bf16.mxu0 0
        %1142 = vmatpush1.bf16.msra.mxu0 %v284
        %1143 = vmatprep.subr.bf16.mxu0 0
        %1144 = vmatpush1.bf16.msra.mxu0 %v285
        %1145 = vmatprep.subr.bf16.mxu0 0
        %1146 = vmatpush1.bf16.msra.mxu0 %v286
        %1147 = vmatprep.subr.bf16.mxu0 0
        %1148 = vmatpush1.bf16.msra.mxu0 %v287
        %1149 = vmatprep.subr.bf16.mxu0 0
        %1150 = vmatpush1.bf16.msra.mxu0 %v288
        %1151 = vmatprep.subr.bf16.mxu0 0
        %1152 = vmatpush1.bf16.msra.mxu0 %v289
        %1153 = vmatprep.subr.bf16.mxu0 0
        %1154 = vmatpush1.bf16.msra.mxu0 %v290
        %1155 = vmatprep.subr.bf16.mxu0 0
        %1156 = vmatpush1.bf16.msra.mxu0 %v302
        %1157 = vmatprep.subr.bf16.mxu0 0
        %1158 = vmatpush1.bf16.msra.mxu0 %v304
        %1159 = vmatprep.subr.bf16.mxu0 0
        %1160 = vmatpush1.bf16.msra.mxu0 %v306
        %1161 = vmatprep.subr.bf16.mxu0 0
        %1162 = vmatpush1.bf16.msra.mxu0 %v308
        %1163 = vmatprep.subr.bf16.mxu0 0
        %1164 = vmatpush1.bf16.msra.mxu0 %v310
        %1165 = vmatprep.subr.bf16.mxu0 0
        %1166 = vmatpush1.bf16.msra.mxu0 %v312
        %1167 = vmatprep.mubr.bf16.mxu0 %v880
        %1168 = vmatmul.mubr.bf16.gmra.mrb[0].mxu0 %v879
        %v1169 = vpop.f32.mrb[0].mxu0
        %v1170 = vadd.f32 0.0, %v1169
        %v1171 = vpop.f32.mrb[0].mxu0
        %v1172 = vpop.f32.mrb[0].mxu0
        %v1173 = vadd.f32 0.0, %v1172
        %v1174 = vpop.f32.mrb[0].mxu0
        %1175 = vmatprep.mubr.bf16.mxu0 %v884
        %1176 = vmatmul.mubr.bf16.gmra.mrb[0].mxu0 %v883
        %v1177 = vpop.f32.mrb[0].mxu0
        %v1178 = vadd.f32 0.0, %v1177
        %v1179 = vpop.f32.mrb[0].mxu0
        %v1180 = vpop.f32.mrb[0].mxu0
        %v1181 = vadd.f32 0.0, %v1180
        %v1182 = vpop.f32.mrb[0].mxu0
        %1183 = vmatprep.mubr.bf16.mxu0 %v888
        %1184 = vmatmul.mubr.bf16.gmra.mrb[0].mxu0 %v887
        %v1185 = vpop.f32.mrb[0].mxu0
        %v1186 = vadd.f32 0.0, %v1185
        %v1187 = vpop.f32.mrb[0].mxu0
        %v1188 = vpop.f32.mrb[0].mxu0
        %v1189 = vadd.f32 0.0, %v1188
        %v1190 = vpop.f32.mrb[0].mxu0
        %1191 = vmatprep.mubr.bf16.mxu0 %v892
        %1192 = vmatmul.mubr.bf16.gmra.mrb[0].mxu0 %v891
        %v1193 = vpop.f32.mrb[0].mxu0
        %v1194 = vadd.f32 0.0, %v1193
        %v1195 = vpop.f32.mrb[0].mxu0
        %v1196 = vpop.f32.mrb[0].mxu0
        %v1197 = vadd.f32 0.0, %v1196
        %v1198 = vpop.f32.mrb[0].mxu0
        %1199 = vmatprep.mubr.bf16.mxu0 %v896
        %1200 = vmatmul.mubr.bf16.gmra.mrb[0].mxu0 %v895
        %v1201 = vpop.f32.mrb[0].mxu0
        %v1202 = vadd.f32 0.0, %v1201
        %v1203 = vpop.f32.mrb[0].mxu0
        %v1204 = vpop.f32.mrb[0].mxu0
        %v1205 = vadd.f32 0.0, %v1204
        %v1206 = vpop.f32.mrb[0].mxu0
        %1207 = vmatprep.mubr.bf16.mxu0 %v900
        %1208 = vmatmul.mubr.bf16.gmra.mrb[0].mxu0 %v899
        %v1209 = vpop.f32.mrb[0].mxu0
        %v1210 = vadd.f32 0.0, %v1209
        %v1211 = vpop.f32.mrb[0].mxu0
        %v1212 = vpop.f32.mrb[0].mxu0
        %v1213 = vadd.f32 0.0, %v1212
        %v1214 = vpop.f32.mrb[0].mxu0
        %1215 = vmatprep.mubr.bf16.mxu0 %v904
        %1216 = vmatmul.mubr.bf16.gmra.mrb[0].mxu0 %v903
        %v1217 = vpop.f32.mrb[0].mxu0
        %v1218 = vadd.f32 0.0, %v1217
        %v1219 = vpop.f32.mrb[0].mxu0
        %v1220 = vpop.f32.mrb[0].mxu0
        %v1221 = vadd.f32 0.0, %v1220
        %v1222 = vpop.f32.mrb[0].mxu0
        %1223 = vmatprep.mubr.bf16.mxu0 %v908
        %1224 = vmatmul.mubr.bf16.gmra.mrb[0].mxu0 %v907
        %v1225 = vpop.f32.mrb[0].mxu0
        %v1226 = vadd.f32 0.0, %v1225
        %v1227 = vpop.f32.mrb[0].mxu0
        %v1228 = vpop.f32.mrb[0].mxu0
        %v1229 = vadd.f32 0.0, %v1228
        %v1230 = vpop.f32.mrb[0].mxu0
        %1231 = vmatprep.mubr.bf16.mxu0 %v912
        %1232 = vmatmul.mubr.bf16.gmra.mrb[0].mxu0 %v911
        %v1233 = vpop.f32.mrb[0].mxu0
        %v1234 = vadd.f32 0.0, %v1233
        %v1235 = vpop.f32.mrb[0].mxu0
        %v1236 = vpop.f32.mrb[0].mxu0
        %v1237 = vadd.f32 0.0, %v1236
        %v1238 = vpop.f32.mrb[0].mxu0
        %1239 = vmatprep.mubr.bf16.mxu0 %v916
        %1240 = vmatmul.mubr.bf16.gmra.mrb[0].mxu0 %v915
        %v1241 = vpop.f32.mrb[0].mxu0
        %v1242 = vadd.f32 0.0, %v1241
        %v1243 = vpop.f32.mrb[0].mxu0
        %v1244 = vpop.f32.mrb[0].mxu0
        %v1245 = vadd.f32 0.0, %v1244
        %v1246 = vpop.f32.mrb[0].mxu0
        %1247 = vmatprep.mubr.bf16.mxu0 %v920
        %1248 = vmatmul.mubr.bf16.gmra.mrb[0].mxu0 %v919
        %v1249 = vpop.f32.mrb[0].mxu0
        %v1250 = vadd.f32 0.0, %v1249
        %v1251 = vpop.f32.mrb[0].mxu0
        %v1252 = vpop.f32.mrb[0].mxu0
        %v1253 = vadd.f32 0.0, %v1252
        %v1254 = vpop.f32.mrb[0].mxu0
        %1255 = vmatprep.mubr.bf16.mxu0 %v924
        %1256 = vmatmul.mubr.bf16.gmra.mrb[0].mxu0 %v923
        %v1257 = vpop.f32.mrb[0].mxu0
        %v1258 = vadd.f32 0.0, %v1257
        %v1259 = vpop.f32.mrb[0].mxu0
        %v1260 = vpop.f32.mrb[0].mxu0
        %v1261 = vadd.f32 0.0, %v1260
        %v1262 = vpop.f32.mrb[0].mxu0
        %1263 = vmatprep.mubr.bf16.mxu0 %v928
        %1264 = vmatmul.mubr.bf16.gmra.mrb[0].mxu0 %v927
        %v1265 = vpop.f32.mrb[0].mxu0
        %v1266 = vadd.f32 0.0, %v1265
        %v1267 = vpop.f32.mrb[0].mxu0
        %v1268 = vpop.f32.mrb[0].mxu0
        %v1269 = vadd.f32 0.0, %v1268
        %v1270 = vpop.f32.mrb[0].mxu0
        %1271 = vmatprep.mubr.bf16.mxu0 %v932
        %1272 = vmatmul.mubr.bf16.gmra.mrb[0].mxu0 %v931
        %v1273 = vpop.f32.mrb[0].mxu0
        %v1274 = vadd.f32 0.0, %v1273
        %v1275 = vpop.f32.mrb[0].mxu0
        %v1276 = vpop.f32.mrb[0].mxu0
        %v1277 = vadd.f32 0.0, %v1276
        %v1278 = vpop.f32.mrb[0].mxu0
        %1279 = vmatprep.mubr.bf16.mxu0 %v936
        %1280 = vmatmul.mubr.bf16.gmra.mrb[0].mxu0 %v935
        %v1281 = vpop.f32.mrb[0].mxu0
        %v1282 = vadd.f32 0.0, %v1281
        %v1283 = vpop.f32.mrb[0].mxu0
        %v1284 = vpop.f32.mrb[0].mxu0
        %v1285 = vadd.f32 0.0, %v1284
        %v1286 = vpop.f32.mrb[0].mxu0
        %1287 = vmatprep.mubr.bf16.mxu0 %v940
        %1288 = vmatmul.mubr.bf16.gmra.mrb[0].mxu0 %v939
        %v1289 = vpop.f32.mrb[0].mxu0
        %v1290 = vadd.f32 0.0, %v1289
        %v1291 = vpop.f32.mrb[0].mxu0
        %v1292 = vpop.f32.mrb[0].mxu0
        %v1293 = vadd.f32 0.0, %v1292
        %v1294 = vpop.f32.mrb[0].mxu0
        %1295 = vmatprep.mubr.bf16.mxu0 %v944
        %1296 = vmatmul.mubr.bf16.gmra.mrb[0].mxu0 %v943
        %v1297 = vpop.f32.mrb[0].mxu0
        %v1298 = vadd.f32 0.0, %v1297
        %v1299 = vpop.f32.mrb[0].mxu0
        %v1300 = vpop.f32.mrb[0].mxu0
        %v1301 = vadd.f32 0.0, %v1300
        %v1302 = vpop.f32.mrb[0].mxu0
        %1303 = vmatprep.mubr.bf16.mxu0 %v948
        %1304 = vmatmul.mubr.bf16.gmra.mrb[0].mxu0 %v947
        %v1305 = vpop.f32.mrb[0].mxu0
        %v1306 = vadd.f32 0.0, %v1305
        %v1307 = vpop.f32.mrb[0].mxu0
        %v1308 = vpop.f32.mrb[0].mxu0
        %v1309 = vadd.f32 0.0, %v1308
        %v1310 = vpop.f32.mrb[0].mxu0
        %1311 = vmatprep.mubr.bf16.mxu0 %v952
        %1312 = vmatmul.mubr.bf16.gmra.mrb[0].mxu0 %v951
        %v1313 = vpop.f32.mrb[0].mxu0
        %v1314 = vadd.f32 0.0, %v1313
        %v1315 = vpop.f32.mrb[0].mxu0
        %v1316 = vpop.f32.mrb[0].mxu0
        %v1317 = vadd.f32 0.0, %v1316
        %v1318 = vpop.f32.mrb[0].mxu0
        %1319 = vmatprep.mubr.bf16.mxu0 %v956
        %1320 = vmatmul.mubr.bf16.gmra.mrb[0].mxu0 %v955
        %v1321 = vpop.f32.mrb[0].mxu0
        %v1322 = vadd.f32 0.0, %v1321
        %v1323 = vpop.f32.mrb[0].mxu0
        %v1324 = vpop.f32.mrb[0].mxu0
        %v1325 = vadd.f32 0.0, %v1324
        %v1326 = vpop.f32.mrb[0].mxu0
        %1327 = vmatprep.mubr.bf16.mxu0 %v960
        %1328 = vmatmul.mubr.bf16.gmra.mrb[0].mxu0 %v959
        %v1329 = vpop.f32.mrb[0].mxu0
        %v1330 = vadd.f32 0.0, %v1329
        %v1331 = vpop.f32.mrb[0].mxu0
        %v1332 = vpop.f32.mrb[0].mxu0
        %v1333 = vadd.f32 0.0, %v1332
        %v1334 = vpop.f32.mrb[0].mxu0
        %1335 = vmatprep.mubr.bf16.mxu0 %v964
        %1336 = vmatmul.mubr.bf16.gmra.mrb[0].mxu0 %v963
        %v1337 = vpop.f32.mrb[0].mxu0
        %v1338 = vadd.f32 0.0, %v1337
        %v1339 = vpop.f32.mrb[0].mxu0
        %v1340 = vpop.f32.mrb[0].mxu0
        %v1341 = vadd.f32 0.0, %v1340
        %v1342 = vpop.f32.mrb[0].mxu0
        %1343 = vmatprep.mubr.bf16.mxu0 %v968
        %1344 = vmatmul.mubr.bf16.gmra.mrb[0].mxu0 %v967
        %v1345 = vpop.f32.mrb[0].mxu0
        %v1346 = vadd.f32 0.0, %v1345
        %v1347 = vpop.f32.mrb[0].mxu0
        %v1348 = vpop.f32.mrb[0].mxu0
        %v1349 = vadd.f32 0.0, %v1348
        %v1350 = vpop.f32.mrb[0].mxu0
        %1351 = vmatprep.mubr.bf16.mxu0 %v972
        %1352 = vmatmul.mubr.bf16.gmra.mrb[0].mxu0 %v971
        %v1353 = vpop.f32.mrb[0].mxu0
        %v1354 = vadd.f32 0.0, %v1353
        %v1355 = vpop.f32.mrb[0].mxu0
        %v1356 = vpop.f32.mrb[0].mxu0
        %v1357 = vadd.f32 0.0, %v1356
        %v1358 = vpop.f32.mrb[0].mxu0
        %1359 = vmatprep.mubr.bf16.mxu0 %v976
        %1360 = vmatmul.mubr.bf16.gmra.mrb[0].mxu0 %v975
        %v1361 = vpop.f32.mrb[0].mxu0
        %v1362 = vadd.f32 0.0, %v1361
        %v1363 = vpop.f32.mrb[0].mxu0
        %v1364 = vpop.f32.mrb[0].mxu0
        %v1365 = vadd.f32 0.0, %v1364
        %v1366 = vpop.f32.mrb[0].mxu0
        %1367 = vmatprep.mubr.bf16.mxu0 %v980
        %1368 = vmatmul.mubr.bf16.gmra.mrb[0].mxu0 %v979
        %v1369 = vpop.f32.mrb[0].mxu0
        %v1370 = vadd.f32 0.0, %v1369
        %v1371 = vpop.f32.mrb[0].mxu0
        %v1372 = vpop.f32.mrb[0].mxu0
        %v1373 = vadd.f32 0.0, %v1372
        %v1374 = vpop.f32.mrb[0].mxu0
        %1375 = vmatprep.mubr.bf16.mxu0 %v984
        %1376 = vmatmul.mubr.bf16.gmra.mrb[0].mxu0 %v983
        %v1377 = vpop.f32.mrb[0].mxu0
        %v1378 = vadd.f32 0.0, %v1377
        %v1379 = vpop.f32.mrb[0].mxu0
        %v1380 = vpop.f32.mrb[0].mxu0
        %v1381 = vadd.f32 0.0, %v1380
        %v1382 = vpop.f32.mrb[0].mxu0
        %1383 = vmatprep.mubr.bf16.mxu0 %v988
        %1384 = vmatmul.mubr.bf16.gmra.mrb[0].mxu0 %v987
        %v1385 = vpop.f32.mrb[0].mxu0
        %v1386 = vadd.f32 0.0, %v1385
        %v1387 = vpop.f32.mrb[0].mxu0
        %v1388 = vpop.f32.mrb[0].mxu0
        %v1389 = vadd.f32 0.0, %v1388
        %v1390 = vpop.f32.mrb[0].mxu0
        %1391 = vmatprep.mubr.bf16.mxu0 %v992
        %1392 = vmatmul.mubr.bf16.gmra.mrb[0].mxu0 %v991
        %v1393 = vpop.f32.mrb[0].mxu0
        %v1394 = vadd.f32 0.0, %v1393
        %v1395 = vpop.f32.mrb[0].mxu0
        %v1396 = vpop.f32.mrb[0].mxu0
        %v1397 = vadd.f32 0.0, %v1396
        %v1398 = vpop.f32.mrb[0].mxu0
        %1399 = vmatprep.mubr.bf16.mxu0 %v996
        %1400 = vmatmul.mubr.bf16.gmra.mrb[0].mxu0 %v995
        %v1401 = vpop.f32.mrb[0].mxu0
        %v1402 = vadd.f32 0.0, %v1401
        %v1403 = vpop.f32.mrb[0].mxu0
        %v1404 = vpop.f32.mrb[0].mxu0
        %v1405 = vadd.f32 0.0, %v1404
        %v1406 = vpop.f32.mrb[0].mxu0
        %1407 = vmatprep.mubr.bf16.mxu0 %v1000
        %1408 = vmatmul.mubr.bf16.gmra.mrb[0].mxu0 %v999
        %v1409 = vpop.f32.mrb[0].mxu0
        %v1410 = vadd.f32 0.0, %v1409
        %v1411 = vpop.f32.mrb[0].mxu0
        %v1412 = vpop.f32.mrb[0].mxu0
        %v1413 = vadd.f32 0.0, %v1412
        %v1414 = vpop.f32.mrb[0].mxu0
        %1415 = vmatprep.mubr.bf16.mxu0 %v1004
        %1416 = vmatmul.mubr.bf16.gmra.mrb[0].mxu0 %v1003
        %v1417 = vpop.f32.mrb[0].mxu0
        %v1418 = vadd.f32 0.0, %v1417
        %v1419 = vpop.f32.mrb[0].mxu0
        %v1420 = vpop.f32.mrb[0].mxu0
        %v1421 = vadd.f32 0.0, %v1420
        %v1422 = vpop.f32.mrb[0].mxu0
        %1423 = vdwg.mxu0
        %1424 = vmatprep.subr.bf16.mxu0 0
        %1425 = vmatpush1.bf16.msra.mxu0 %v314
        %1426 = vmatprep.subr.bf16.mxu0 0
        %1427 = vmatpush1.bf16.msra.mxu0 %v316
        %1428 = vmatprep.subr.bf16.mxu0 0
        %1429 = vmatpush1.bf16.msra.mxu0 %v318
        %1430 = vmatprep.subr.bf16.mxu0 0
        %1431 = vmatpush1.bf16.msra.mxu0 %v320
        %1432 = vmatprep.subr.bf16.mxu0 0
        %1433 = vmatpush1.bf16.msra.mxu0 %v332
        %1434 = vmatprep.subr.bf16.mxu0 0
        %1435 = vmatpush1.bf16.msra.mxu0 %v334
        %1436 = vmatprep.subr.bf16.mxu0 0
        %1437 = vmatpush1.bf16.msra.mxu0 %v336
        %1438 = vmatprep.subr.bf16.mxu0 0
        %1439 = vmatpush1.bf16.msra.mxu0 %v338
        %1440 = vmatprep.subr.bf16.mxu0 0
        %1441 = vmatpush1.bf16.msra.mxu0 %v340
        %1442 = vmatprep.subr.bf16.mxu0 0
        %1443 = vmatpush1.bf16.msra.mxu0 %v342
        %1444 = vmatprep.subr.bf16.mxu0 0
        %1445 = vmatpush1.bf16.msra.mxu0 %v344
        %1446 = vmatprep.subr.bf16.mxu0 0
        %1447 = vmatpush1.bf16.msra.mxu0 %v346
        %1448 = vmatprep.subr.bf16.mxu0 0
        %1449 = vmatpush1.bf16.msra.mxu0 %v348
        %1450 = vmatprep.subr.bf16.mxu0 0
        %1451 = vmatpush1.bf16.msra.mxu0 %v350
        %1452 = vmatprep.subr.bf16.mxu0 0
        %1453 = vmatpush1.bf16.msra.mxu0 %v362
        %1454 = vmatprep.subr.bf16.mxu0 0
        %1455 = vmatpush1.bf16.msra.mxu0 %v364
        %1456 = vmatprep.mubr.bf16.mxu0 %v882
        %1457 = vmatmul.mubr.bf16.gmra.mrb[0].mxu0 %v881
        %v1458 = vpop.f32.mrb[0].mxu0
        %v1459 = vadd.f32 %v1170, %v1458
        %v1460 = vpop.f32.mrb[0].mxu0
        %v1461 = vpop.f32.mrb[0].mxu0
        %v1462 = vadd.f32 %v1173, %v1461
        %v1463 = vpop.f32.mrb[0].mxu0
        %1464 = vmatprep.mubr.bf16.mxu0 %v886
        %1465 = vmatmul.mubr.bf16.gmra.mrb[0].mxu0 %v885
        %v1466 = vpop.f32.mrb[0].mxu0
        %v1467 = vadd.f32 %v1178, %v1466
        %v1468 = vpop.f32.mrb[0].mxu0
        %v1469 = vpop.f32.mrb[0].mxu0
        %v1470 = vadd.f32 %v1181, %v1469
        %v1471 = vpop.f32.mrb[0].mxu0
        %1472 = vmatprep.mubr.bf16.mxu0 %v890
        %1473 = vmatmul.mubr.bf16.gmra.mrb[0].mxu0 %v889
        %v1474 = vpop.f32.mrb[0].mxu0
        %v1475 = vadd.f32 %v1186, %v1474
        %v1476 = vpop.f32.mrb[0].mxu0
        %v1477 = vpop.f32.mrb[0].mxu0
        %v1478 = vadd.f32 %v1189, %v1477
        %v1479 = vpop.f32.mrb[0].mxu0
        %1480 = vmatprep.mubr.bf16.mxu0 %v894
        %1481 = vmatmul.mubr.bf16.gmra.mrb[0].mxu0 %v893
        %v1482 = vpop.f32.mrb[0].mxu0
        %v1483 = vadd.f32 %v1194, %v1482
        %v1484 = vpop.f32.mrb[0].mxu0
        %v1485 = vpop.f32.mrb[0].mxu0
        %v1486 = vadd.f32 %v1197, %v1485
        %v1487 = vpop.f32.mrb[0].mxu0
        %1488 = vmatprep.mubr.bf16.mxu0 %v898
        %1489 = vmatmul.mubr.bf16.gmra.mrb[0].mxu0 %v897
        %v1490 = vpop.f32.mrb[0].mxu0
        %v1491 = vadd.f32 %v1202, %v1490
        %v1492 = vpop.f32.mrb[0].mxu0
        %v1493 = vpop.f32.mrb[0].mxu0
        %v1494 = vadd.f32 %v1205, %v1493
        %v1495 = vpop.f32.mrb[0].mxu0
        %1496 = vmatprep.mubr.bf16.mxu0 %v902
        %1497 = vmatmul.mubr.bf16.gmra.mrb[0].mxu0 %v901
        %v1498 = vpop.f32.mrb[0].mxu0
        %v1499 = vadd.f32 %v1210, %v1498
        %v1500 = vpop.f32.mrb[0].mxu0
        %v1501 = vpop.f32.mrb[0].mxu0
        %v1502 = vadd.f32 %v1213, %v1501
        %v1503 = vpop.f32.mrb[0].mxu0
        %1504 = vmatprep.mubr.bf16.mxu0 %v906
        %1505 = vmatmul.mubr.bf16.gmra.mrb[0].mxu0 %v905
        %v1506 = vpop.f32.mrb[0].mxu0
        %v1507 = vadd.f32 %v1218, %v1506
        %v1508 = vpop.f32.mrb[0].mxu0
        %v1509 = vpop.f32.mrb[0].mxu0
        %v1510 = vadd.f32 %v1221, %v1509
        %v1511 = vpop.f32.mrb[0].mxu0
        %1512 = vmatprep.mubr.bf16.mxu0 %v910
        %1513 = vmatmul.mubr.bf16.gmra.mrb[0].mxu0 %v909
        %v1514 = vpop.f32.mrb[0].mxu0
        %v1515 = vadd.f32 %v1226, %v1514
        %v1516 = vpop.f32.mrb[0].mxu0
        %v1517 = vpop.f32.mrb[0].mxu0
        %v1518 = vadd.f32 %v1229, %v1517
        %v1519 = vpop.f32.mrb[0].mxu0
        %1520 = vmatprep.mubr.bf16.mxu0 %v914
        %1521 = vmatmul.mubr.bf16.gmra.mrb[0].mxu0 %v913
        %v1522 = vpop.f32.mrb[0].mxu0
        %v1523 = vadd.f32 %v1234, %v1522
        %v1524 = vpop.f32.mrb[0].mxu0
        %v1525 = vpop.f32.mrb[0].mxu0
        %v1526 = vadd.f32 %v1237, %v1525
        %v1527 = vpop.f32.mrb[0].mxu0
        %1528 = vmatprep.mubr.bf16.mxu0 %v918
        %1529 = vmatmul.mubr.bf16.gmra.mrb[0].mxu0 %v917
        %v1530 = vpop.f32.mrb[0].mxu0
        %v1531 = vadd.f32 %v1242, %v1530
        %v1532 = vpop.f32.mrb[0].mxu0
        %v1533 = vpop.f32.mrb[0].mxu0
        %v1534 = vadd.f32 %v1245, %v1533
        %v1535 = vpop.f32.mrb[0].mxu0
        %1536 = vmatprep.mubr.bf16.mxu0 %v922
        %1537 = vmatmul.mubr.bf16.gmra.mrb[0].mxu0 %v921
        %v1538 = vpop.f32.mrb[0].mxu0
        %v1539 = vadd.f32 %v1250, %v1538
        %v1540 = vpop.f32.mrb[0].mxu0
        %v1541 = vpop.f32.mrb[0].mxu0
        %v1542 = vadd.f32 %v1253, %v1541
        %v1543 = vpop.f32.mrb[0].mxu0
        %1544 = vmatprep.mubr.bf16.mxu0 %v926
        %1545 = vmatmul.mubr.bf16.gmra.mrb[0].mxu0 %v925
        %v1546 = vpop.f32.mrb[0].mxu0
        %v1547 = vadd.f32 %v1258, %v1546
        %v1548 = vpop.f32.mrb[0].mxu0
        %v1549 = vpop.f32.mrb[0].mxu0
        %v1550 = vadd.f32 %v1261, %v1549
        %v1551 = vpop.f32.mrb[0].mxu0
        %1552 = vmatprep.mubr.bf16.mxu0 %v930
        %1553 = vmatmul.mubr.bf16.gmra.mrb[0].mxu0 %v929
        %v1554 = vpop.f32.mrb[0].mxu0
        %v1555 = vadd.f32 %v1266, %v1554
        %v1556 = vpop.f32.mrb[0].mxu0
        %v1557 = vpop.f32.mrb[0].mxu0
        %v1558 = vadd.f32 %v1269, %v1557
        %v1559 = vpop.f32.mrb[0].mxu0
        %1560 = vmatprep.mubr.bf16.mxu0 %v934
        %1561 = vmatmul.mubr.bf16.gmra.mrb[0].mxu0 %v933
        %v1562 = vpop.f32.mrb[0].mxu0
        %v1563 = vadd.f32 %v1274, %v1562
        %v1564 = vpop.f32.mrb[0].mxu0
        %v1565 = vpop.f32.mrb[0].mxu0
        %v1566 = vadd.f32 %v1277, %v1565
        %v1567 = vpop.f32.mrb[0].mxu0
        %1568 = vmatprep.mubr.bf16.mxu0 %v938
        %1569 = vmatmul.mubr.bf16.gmra.mrb[0].mxu0 %v937
        %v1570 = vpop.f32.mrb[0].mxu0
        %v1571 = vadd.f32 %v1282, %v1570
        %v1572 = vpop.f32.mrb[0].mxu0
        %v1573 = vpop.f32.mrb[0].mxu0
        %v1574 = vadd.f32 %v1285, %v1573
        %v1575 = vpop.f32.mrb[0].mxu0
        %1576 = vmatprep.mubr.bf16.mxu0 %v942
        %1577 = vmatmul.mubr.bf16.gmra.mrb[0].mxu0 %v941
        %v1578 = vpop.f32.mrb[0].mxu0
        %v1579 = vadd.f32 %v1290, %v1578
        %v1580 = vpop.f32.mrb[0].mxu0
        %v1581 = vpop.f32.mrb[0].mxu0
        %v1582 = vadd.f32 %v1293, %v1581
        %v1583 = vpop.f32.mrb[0].mxu0
        %1584 = vmatprep.mubr.bf16.mxu0 %v946
        %1585 = vmatmul.mubr.bf16.gmra.mrb[0].mxu0 %v945
        %v1586 = vpop.f32.mrb[0].mxu0
        %v1587 = vadd.f32 %v1298, %v1586
        %v1588 = vpop.f32.mrb[0].mxu0
        %v1589 = vpop.f32.mrb[0].mxu0
        %v1590 = vadd.f32 %v1301, %v1589
        %v1591 = vpop.f32.mrb[0].mxu0
        %1592 = vmatprep.mubr.bf16.mxu0 %v950
        %1593 = vmatmul.mubr.bf16.gmra.mrb[0].mxu0 %v949
        %v1594 = vpop.f32.mrb[0].mxu0
        %v1595 = vadd.f32 %v1306, %v1594
        %v1596 = vpop.f32.mrb[0].mxu0
        %v1597 = vpop.f32.mrb[0].mxu0
        %v1598 = vadd.f32 %v1309, %v1597
        %v1599 = vpop.f32.mrb[0].mxu0
        %1600 = vmatprep.mubr.bf16.mxu0 %v954
        %1601 = vmatmul.mubr.bf16.gmra.mrb[0].mxu0 %v953
        %v1602 = vpop.f32.mrb[0].mxu0
        %v1603 = vadd.f32 %v1314, %v1602
        %v1604 = vpop.f32.mrb[0].mxu0
        %v1605 = vpop.f32.mrb[0].mxu0
        %v1606 = vadd.f32 %v1317, %v1605
        %v1607 = vpop.f32.mrb[0].mxu0
        %1608 = vmatprep.mubr.bf16.mxu0 %v958
        %1609 = vmatmul.mubr.bf16.gmra.mrb[0].mxu0 %v957
        %v1610 = vpop.f32.mrb[0].mxu0
        %v1611 = vadd.f32 %v1322, %v1610
        %v1612 = vpop.f32.mrb[0].mxu0
        %v1613 = vpop.f32.mrb[0].mxu0
        %v1614 = vadd.f32 %v1325, %v1613
        %v1615 = vpop.f32.mrb[0].mxu0
        %1616 = vmatprep.mubr.bf16.mxu0 %v962
        %1617 = vmatmul.mubr.bf16.gmra.mrb[0].mxu0 %v961
        %v1618 = vpop.f32.mrb[0].mxu0
        %v1619 = vadd.f32 %v1330, %v1618
        %v1620 = vpop.f32.mrb[0].mxu0
        %v1621 = vpop.f32.mrb[0].mxu0
        %v1622 = vadd.f32 %v1333, %v1621
        %v1623 = vpop.f32.mrb[0].mxu0
        %1624 = vmatprep.mubr.bf16.mxu0 %v966
        %1625 = vmatmul.mubr.bf16.gmra.mrb[0].mxu0 %v965
        %v1626 = vpop.f32.mrb[0].mxu0
        %v1627 = vadd.f32 %v1338, %v1626
        %v1628 = vpop.f32.mrb[0].mxu0
        %v1629 = vpop.f32.mrb[0].mxu0
        %v1630 = vadd.f32 %v1341, %v1629
        %v1631 = vpop.f32.mrb[0].mxu0
        %1632 = vmatprep.mubr.bf16.mxu0 %v970
        %1633 = vmatmul.mubr.bf16.gmra.mrb[0].mxu0 %v969
        %v1634 = vpop.f32.mrb[0].mxu0
        %v1635 = vadd.f32 %v1346, %v1634
        %v1636 = vpop.f32.mrb[0].mxu0
        %v1637 = vpop.f32.mrb[0].mxu0
        %v1638 = vadd.f32 %v1349, %v1637
        %v1639 = vpop.f32.mrb[0].mxu0
        %1640 = vmatprep.mubr.bf16.mxu0 %v974
        %1641 = vmatmul.mubr.bf16.gmra.mrb[0].mxu0 %v973
        %v1642 = vpop.f32.mrb[0].mxu0
        %v1643 = vadd.f32 %v1354, %v1642
        %v1644 = vpop.f32.mrb[0].mxu0
        %v1645 = vpop.f32.mrb[0].mxu0
        %v1646 = vadd.f32 %v1357, %v1645
        %v1647 = vpop.f32.mrb[0].mxu0
        %1648 = vmatprep.mubr.bf16.mxu0 %v978
        %1649 = vmatmul.mubr.bf16.gmra.mrb[0].mxu0 %v977
        %v1650 = vpop.f32.mrb[0].mxu0
        %v1651 = vadd.f32 %v1362, %v1650
        %v1652 = vpop.f32.mrb[0].mxu0
        %v1653 = vpop.f32.mrb[0].mxu0
        %v1654 = vadd.f32 %v1365, %v1653
        %v1655 = vpop.f32.mrb[0].mxu0
        %1656 = vmatprep.mubr.bf16.mxu0 %v982
        %1657 = vmatmul.mubr.bf16.gmra.mrb[0].mxu0 %v981
        %v1658 = vpop.f32.mrb[0].mxu0
        %v1659 = vadd.f32 %v1370, %v1658
        %v1660 = vpop.f32.mrb[0].mxu0
        %v1661 = vpop.f32.mrb[0].mxu0
        %v1662 = vadd.f32 %v1373, %v1661
        %v1663 = vpop.f32.mrb[0].mxu0
        %1664 = vmatprep.mubr.bf16.mxu0 %v986
        %1665 = vmatmul.mubr.bf16.gmra.mrb[0].mxu0 %v985
        %v1666 = vpop.f32.mrb[0].mxu0
        %v1667 = vadd.f32 %v1378, %v1666
        %v1668 = vpop.f32.mrb[0].mxu0
        %v1669 = vpop.f32.mrb[0].mxu0
        %v1670 = vadd.f32 %v1381, %v1669
        %v1671 = vpop.f32.mrb[0].mxu0
        %1672 = vmatprep.mubr.bf16.mxu0 %v990
        %1673 = vmatmul.mubr.bf16.gmra.mrb[0].mxu0 %v989
        %v1674 = vpop.f32.mrb[0].mxu0
        %v1675 = vadd.f32 %v1386, %v1674
        %v1676 = vpop.f32.mrb[0].mxu0
        %v1677 = vpop.f32.mrb[0].mxu0
        %v1678 = vadd.f32 %v1389, %v1677
        %v1679 = vpop.f32.mrb[0].mxu0
        %1680 = vmatprep.mubr.bf16.mxu0 %v994
        %1681 = vmatmul.mubr.bf16.gmra.mrb[0].mxu0 %v993
        %v1682 = vpop.f32.mrb[0].mxu0
        %v1683 = vadd.f32 %v1394, %v1682
        %v1684 = vpop.f32.mrb[0].mxu0
        %v1685 = vpop.f32.mrb[0].mxu0
        %v1686 = vadd.f32 %v1397, %v1685
        %v1687 = vpop.f32.mrb[0].mxu0
        %1688 = vmatprep.mubr.bf16.mxu0 %v998
        %1689 = vmatmul.mubr.bf16.gmra.mrb[0].mxu0 %v997
        %v1690 = vpop.f32.mrb[0].mxu0
        %v1691 = vadd.f32 %v1402, %v1690
        %v1692 = vpop.f32.mrb[0].mxu0
        %v1693 = vpop.f32.mrb[0].mxu0
        %v1694 = vadd.f32 %v1405, %v1693
        %v1695 = vpop.f32.mrb[0].mxu0
        %1696 = vmatprep.mubr.bf16.mxu0 %v1002
        %1697 = vmatmul.mubr.bf16.gmra.mrb[0].mxu0 %v1001
        %v1698 = vpop.f32.mrb[0].mxu0
        %v1699 = vadd.f32 %v1410, %v1698
        %v1700 = vpop.f32.mrb[0].mxu0
        %v1701 = vpop.f32.mrb[0].mxu0
        %v1702 = vadd.f32 %v1413, %v1701
        %v1703 = vpop.f32.mrb[0].mxu0
        %1704 = vmatprep.mubr.bf16.mxu0 %v1006
        %1705 = vmatmul.mubr.bf16.gmra.mrb[0].mxu0 %v1005
        %v1706 = vpop.f32.mrb[0].mxu0
        %v1707 = vadd.f32 %v1418, %v1706
        %v1708 = vpop.f32.mrb[0].mxu0
        %v1709 = vpop.f32.mrb[0].mxu0
        %v1710 = vadd.f32 %v1421, %v1709
        %v1711 = vpop.f32.mrb[0].mxu0
        %1712 = vdwg.mxu0
        %v1713 = vmul.f32 %v1459, %v1459
        %v1714 = vmul.f32 %v1462, %v1462
        %v1715 = vmul.f32 %v1467, %v1467
        %v1716 = vmul.f32 %v1470, %v1470
        %v1717 = vmul.f32 %v1475, %v1475
        %v1718 = vmul.f32 %v1478, %v1478
        %v1719 = vmul.f32 %v1483, %v1483
        %v1720 = vmul.f32 %v1486, %v1486
        %v1721 = vmul.f32 %v1491, %v1491
        %v1722 = vmul.f32 %v1494, %v1494
        %v1723 = vmul.f32 %v1499, %v1499
        %v1724 = vmul.f32 %v1502, %v1502
        %v1725 = vmul.f32 %v1507, %v1507
        %v1726 = vmul.f32 %v1510, %v1510
        %v1727 = vmul.f32 %v1515, %v1515
        %v1728 = vmul.f32 %v1518, %v1518
        %v1729 = vmul.f32 %v1523, %v1523
        %v1730 = vmul.f32 %v1526, %v1526
        %v1731 = vmul.f32 %v1531, %v1531
        %v1732 = vmul.f32 %v1534, %v1534
        %v1733 = vmul.f32 %v1539, %v1539
        %v1734 = vmul.f32 %v1542, %v1542
        %v1735 = vmul.f32 %v1547, %v1547
        %v1736 = vmul.f32 %v1550, %v1550
        %v1737 = vmul.f32 %v1555, %v1555
        %v1738 = vmul.f32 %v1558, %v1558
        %v1739 = vmul.f32 %v1563, %v1563
        %v1740 = vmul.f32 %v1566, %v1566
        %v1741 = vmul.f32 %v1571, %v1571
        %v1742 = vmul.f32 %v1574, %v1574
        %v1743 = vmul.f32 %v1579, %v1579
        %v1744 = vmul.f32 %v1582, %v1582
        %v1745 = vmul.f32 %v1587, %v1587
        %v1746 = vmul.f32 %v1590, %v1590
        %v1747 = vmul.f32 %v1595, %v1595
        %v1748 = vmul.f32 %v1598, %v1598
        %v1749 = vmul.f32 %v1603, %v1603
        %v1750 = vmul.f32 %v1606, %v1606
        %v1751 = vmul.f32 %v1611, %v1611
        %v1752 = vmul.f32 %v1614, %v1614
        %v1753 = vmul.f32 %v1619, %v1619
        %v1754 = vmul.f32 %v1622, %v1622
        %v1755 = vmul.f32 %v1627, %v1627
        %v1756 = vmul.f32 %v1630, %v1630
        %v1757 = vmul.f32 %v1635, %v1635
        %v1758 = vmul.f32 %v1638, %v1638
        %v1759 = vmul.f32 %v1643, %v1643
        %v1760 = vmul.f32 %v1646, %v1646
        %v1761 = vmul.f32 %v1651, %v1651
        %v1762 = vmul.f32 %v1654, %v1654
        %v1763 = vmul.f32 %v1659, %v1659
        %v1764 = vmul.f32 %v1662, %v1662
        %v1765 = vmul.f32 %v1667, %v1667
        %v1766 = vmul.f32 %v1670, %v1670
        %v1767 = vmul.f32 %v1675, %v1675
        %v1768 = vmul.f32 %v1678, %v1678
        %v1769 = vmul.f32 %v1683, %v1683
        %v1770 = vmul.f32 %v1686, %v1686
        %v1771 = vmul.f32 %v1691, %v1691
        %v1772 = vmul.f32 %v1694, %v1694
        %v1773 = vmul.f32 %v1699, %v1699
        %v1774 = vmul.f32 %v1702, %v1702
        %v1775 = vmul.f32 %v1707, %v1707
        %v1776 = vmul.f32 %v1710, %v1710
        %v1777 = vadd.f32 %v1713, %v1745
        %v1778 = vadd.f32 %v1714, %v1746
        %v1779 = vadd.f32 %v1715, %v1747
        %v1780 = vadd.f32 %v1716, %v1748
        %v1781 = vadd.f32 %v1717, %v1749
        %v1782 = vadd.f32 %v1718, %v1750
        %v1783 = vadd.f32 %v1719, %v1751
        %v1784 = vadd.f32 %v1720, %v1752
        %v1785 = vadd.f32 %v1721, %v1753
        %v1786 = vadd.f32 %v1722, %v1754
        %v1787 = vadd.f32 %v1723, %v1755
        %v1788 = vadd.f32 %v1724, %v1756
        %v1789 = vadd.f32 %v1725, %v1757
        %v1790 = vadd.f32 %v1726, %v1758
        %v1791 = vadd.f32 %v1727, %v1759
        %v1792 = vadd.f32 %v1728, %v1760
        %v1793 = vadd.f32 %v1729, %v1761
        %v1794 = vadd.f32 %v1730, %v1762
        %v1795 = vadd.f32 %v1731, %v1763
        %v1796 = vadd.f32 %v1732, %v1764
        %v1797 = vadd.f32 %v1733, %v1765
        %v1798 = vadd.f32 %v1734, %v1766
        %v1799 = vadd.f32 %v1735, %v1767
        %v1800 = vadd.f32 %v1736, %v1768
        %v1801 = vadd.f32 %v1737, %v1769
        %v1802 = vadd.f32 %v1738, %v1770
        %v1803 = vadd.f32 %v1739, %v1771
        %v1804 = vadd.f32 %v1740, %v1772
        %v1805 = vadd.f32 %v1741, %v1773
        %v1806 = vadd.f32 %v1742, %v1774
        %v1807 = vadd.f32 %v1743, %v1775
        %v1808 = vadd.f32 %v1744, %v1776
        %v1809 = vpack.c.bf16 %v1778, %v1777
        %v1810 = vpack.c.bf16 %v1780, %v1779
        %v1811 = vpack.c.bf16 %v1782, %v1781
        %v1812 = vpack.c.bf16 %v1784, %v1783
        %v1813 = vpack.c.bf16 %v1786, %v1785
        %v1814 = vpack.c.bf16 %v1788, %v1787
        %v1815 = vpack.c.bf16 %v1790, %v1789
        %v1816 = vpack.c.bf16 %v1792, %v1791
        %v1817 = vpack.c.bf16 %v1794, %v1793
        %v1818 = vpack.c.bf16 %v1796, %v1795
        %v1819 = vpack.c.bf16 %v1798, %v1797
        %v1820 = vpack.c.bf16 %v1800, %v1799
        %v1821 = vpack.c.bf16 %v1802, %v1801
        %v1822 = vpack.c.bf16 %v1804, %v1803
        %v1823 = vpack.c.bf16 %v1806, %v1805
        %v1824 = vpack.c.bf16 %v1808, %v1807
        %v1825 = vrsqrt.bf16.pop %v1809
        %v1826 = vmul.bf16 %v1809, %v1825
        %vm1828 = vcmp.eq.bf16.partialorder %v1809, 2139127680
        %v1829 = vsel %vm1828, %v1809, %v1826
        %vm1831 = vcmp.eq.bf16.partialorder %v1809, 0
        %v1832 = vand.u32 2147450879, 0
        %v1833 = vand.u32 %v1809, 2147516416
        %v1834 = vor.u32 %v1832, %v1833
        %v1835 = vsel %vm1831, %v1834, %v1829
        %v1836 = vrsqrt.bf16.pop %v1810
        %v1837 = vmul.bf16 %v1810, %v1836
        %vm1839 = vcmp.eq.bf16.partialorder %v1810, 2139127680
        %v1840 = vsel %vm1839, %v1810, %v1837
        %vm1842 = vcmp.eq.bf16.partialorder %v1810, 0
        %v1843 = vand.u32 2147450879, 0
        %v1844 = vand.u32 %v1810, 2147516416
        %v1845 = vor.u32 %v1843, %v1844
        %v1846 = vsel %vm1842, %v1845, %v1840
        %v1847 = vrsqrt.bf16.pop %v1811
        %v1848 = vmul.bf16 %v1811, %v1847
        %vm1850 = vcmp.eq.bf16.partialorder %v1811, 2139127680
        %v1851 = vsel %vm1850, %v1811, %v1848
        %vm1853 = vcmp.eq.bf16.partialorder %v1811, 0
        %v1854 = vand.u32 2147450879, 0
        %v1855 = vand.u32 %v1811, 2147516416
        %v1856 = vor.u32 %v1854, %v1855
        %v1857 = vsel %vm1853, %v1856, %v1851
        %v1858 = vrsqrt.bf16.pop %v1812
        %v1859 = vmul.bf16 %v1812, %v1858
        %vm1861 = vcmp.eq.bf16.partialorder %v1812, 2139127680
        %v1862 = vsel %vm1861, %v1812, %v1859
        %vm1864 = vcmp.eq.bf16.partialorder %v1812, 0
        %v1865 = vand.u32 2147450879, 0
        %v1866 = vand.u32 %v1812, 2147516416
        %v1867 = vor.u32 %v1865, %v1866
        %v1868 = vsel %vm1864, %v1867, %v1862
        %v1869 = vrsqrt.bf16.pop %v1813
        %v1870 = vmul.bf16 %v1813, %v1869
        %vm1872 = vcmp.eq.bf16.partialorder %v1813, 2139127680
        %v1873 = vsel %vm1872, %v1813, %v1870
        %vm1875 = vcmp.eq.bf16.partialorder %v1813, 0
        %v1876 = vand.u32 2147450879, 0
        %v1877 = vand.u32 %v1813, 2147516416
        %v1878 = vor.u32 %v1876, %v1877
        %v1879 = vsel %vm1875, %v1878, %v1873
        %v1880 = vrsqrt.bf16.pop %v1814
        %v1881 = vmul.bf16 %v1814, %v1880
        %vm1883 = vcmp.eq.bf16.partialorder %v1814, 2139127680
        %v1884 = vsel %vm1883, %v1814, %v1881
        %vm1886 = vcmp.eq.bf16.partialorder %v1814, 0
        %v1887 = vand.u32 2147450879, 0
        %v1888 = vand.u32 %v1814, 2147516416
        %v1889 = vor.u32 %v1887, %v1888
        %v1890 = vsel %vm1886, %v1889, %v1884
        %v1891 = vrsqrt.bf16.pop %v1815
        %v1892 = vmul.bf16 %v1815, %v1891
        %vm1894 = vcmp.eq.bf16.partialorder %v1815, 2139127680
        %v1895 = vsel %vm1894, %v1815, %v1892
        %vm1897 = vcmp.eq.bf16.partialorder %v1815, 0
        %v1898 = vand.u32 2147450879, 0
        %v1899 = vand.u32 %v1815, 2147516416
        %v1900 = vor.u32 %v1898, %v1899
        %v1901 = vsel %vm1897, %v1900, %v1895
        %v1902 = vrsqrt.bf16.pop %v1816
        %v1903 = vmul.bf16 %v1816, %v1902
        %vm1905 = vcmp.eq.bf16.partialorder %v1816, 2139127680
        %v1906 = vsel %vm1905, %v1816, %v1903
        %vm1908 = vcmp.eq.bf16.partialorder %v1816, 0
        %v1909 = vand.u32 2147450879, 0
        %v1910 = vand.u32 %v1816, 2147516416
        %v1911 = vor.u32 %v1909, %v1910
        %v1912 = vsel %vm1908, %v1911, %v1906
        %v1913 = vrsqrt.bf16.pop %v1817
        %v1914 = vmul.bf16 %v1817, %v1913
        %vm1916 = vcmp.eq.bf16.partialorder %v1817, 2139127680
        %v1917 = vsel %vm1916, %v1817, %v1914
        %vm1919 = vcmp.eq.bf16.partialorder %v1817, 0
        %v1920 = vand.u32 2147450879, 0
        %v1921 = vand.u32 %v1817, 2147516416
        %v1922 = vor.u32 %v1920, %v1921
        %v1923 = vsel %vm1919, %v1922, %v1917
        %v1924 = vrsqrt.bf16.pop %v1818
        %v1925 = vmul.bf16 %v1818, %v1924
        %vm1927 = vcmp.eq.bf16.partialorder %v1818, 2139127680
        %v1928 = vsel %vm1927, %v1818, %v1925
        %vm1930 = vcmp.eq.bf16.partialorder %v1818, 0
        %v1931 = vand.u32 2147450879, 0
        %v1932 = vand.u32 %v1818, 2147516416
        %v1933 = vor.u32 %v1931, %v1932
        %v1934 = vsel %vm1930, %v1933, %v1928
        %v1935 = vrsqrt.bf16.pop %v1819
        %v1936 = vmul.bf16 %v1819, %v1935
        %vm1938 = vcmp.eq.bf16.partialorder %v1819, 2139127680
        %v1939 = vsel %vm1938, %v1819, %v1936
        %vm1941 = vcmp.eq.bf16.partialorder %v1819, 0
        %v1942 = vand.u32 2147450879, 0
        %v1943 = vand.u32 %v1819, 2147516416
        %v1944 = vor.u32 %v1942, %v1943
        %v1945 = vsel %vm1941, %v1944, %v1939
        %v1946 = vrsqrt.bf16.pop %v1820
        %v1947 = vmul.bf16 %v1820, %v1946
        %vm1949 = vcmp.eq.bf16.partialorder %v1820, 2139127680
        %v1950 = vsel %vm1949, %v1820, %v1947
        %vm1952 = vcmp.eq.bf16.partialorder %v1820, 0
        %v1953 = vand.u32 2147450879, 0
        %v1954 = vand.u32 %v1820, 2147516416
        %v1955 = vor.u32 %v1953, %v1954
        %v1956 = vsel %vm1952, %v1955, %v1950
        %v1957 = vrsqrt.bf16.pop %v1821
        %v1958 = vmul.bf16 %v1821, %v1957
        %vm1960 = vcmp.eq.bf16.partialorder %v1821, 2139127680
        %v1961 = vsel %vm1960, %v1821, %v1958
        %vm1963 = vcmp.eq.bf16.partialorder %v1821, 0
        %v1964 = vand.u32 2147450879, 0
        %v1965 = vand.u32 %v1821, 2147516416
        %v1966 = vor.u32 %v1964, %v1965
        %v1967 = vsel %vm1963, %v1966, %v1961
        %v1968 = vrsqrt.bf16.pop %v1822
        %v1969 = vmul.bf16 %v1822, %v1968
        %vm1971 = vcmp.eq.bf16.partialorder %v1822, 2139127680
        %v1972 = vsel %vm1971, %v1822, %v1969
        %vm1974 = vcmp.eq.bf16.partialorder %v1822, 0
        %v1975 = vand.u32 2147450879, 0
        %v1976 = vand.u32 %v1822, 2147516416
        %v1977 = vor.u32 %v1975, %v1976
        %v1978 = vsel %vm1974, %v1977, %v1972
        %v1979 = vrsqrt.bf16.pop %v1823
        %v1980 = vmul.bf16 %v1823, %v1979
        %vm1982 = vcmp.eq.bf16.partialorder %v1823, 2139127680
        %v1983 = vsel %vm1982, %v1823, %v1980
        %vm1985 = vcmp.eq.bf16.partialorder %v1823, 0
        %v1986 = vand.u32 2147450879, 0
        %v1987 = vand.u32 %v1823, 2147516416
        %v1988 = vor.u32 %v1986, %v1987
        %v1989 = vsel %vm1985, %v1988, %v1983
        %v1990 = vrsqrt.bf16.pop %v1824
        %v1991 = vmul.bf16 %v1824, %v1990
        %vm1993 = vcmp.eq.bf16.partialorder %v1824, 2139127680
        %v1994 = vsel %vm1993, %v1824, %v1991
        %vm1996 = vcmp.eq.bf16.partialorder %v1824, 0
        %v1997 = vand.u32 2147450879, 0
        %v1998 = vand.u32 %v1824, 2147516416
        %v1999 = vor.u32 %v1997, %v1998
        %v2000 = vsel %vm1996, %v1999, %v1994
        %v2001 = vld [vmem:[%s2] sm:$0xff]
        %v2002 = vld [vmem:[%s2 + $0x8] sm:$0xff]
        %v2003 = vld [vmem:[%s2 + $0x10] sm:$0xff]
        %v2004 = vld [vmem:[%s2 + $0x18] sm:$0xff]
        %v2005 = vld [vmem:[%s2 + $0x20] sm:$0xff]
        %v2006 = vld [vmem:[%s2 + $0x28] sm:$0xff]
        %v2007 = vld [vmem:[%s2 + $0x30] sm:$0xff]
        %v2008 = vld [vmem:[%s2 + $0x38] sm:$0xff]
        %v2009 = vld [vmem:[%s2 + $0x40] sm:$0xff]
        %v2010 = vld [vmem:[%s2 + $0x48] sm:$0xff]
        %v2011 = vld [vmem:[%s2 + $0x50] sm:$0xff]
        %v2012 = vld [vmem:[%s2 + $0x58] sm:$0xff]
        %v2013 = vld [vmem:[%s2 + $0x60] sm:$0xff]
        %v2014 = vld [vmem:[%s2 + $0x68] sm:$0xff]
        %v2015 = vld [vmem:[%s2 + $0x70] sm:$0xff]
        %v2016 = vld [vmem:[%s2 + $0x78] sm:$0xff]
        %v2033 = vunpack.c.l.b16 %v2001
        %v2034 = vunpack.c.h.b16 %v2001
        %v2035 = vunpack.c.l.b16 %v2002
        %v2036 = vunpack.c.h.b16 %v2002
        %v2037 = vunpack.c.l.b16 %v2003
        %v2038 = vunpack.c.h.b16 %v2003
        %v2039 = vunpack.c.l.b16 %v2004
        %v2040 = vunpack.c.h.b16 %v2004
        %v2041 = vunpack.c.l.b16 %v2005
        %v2042 = vunpack.c.h.b16 %v2005
        %v2043 = vunpack.c.l.b16 %v2006
        %v2044 = vunpack.c.h.b16 %v2006
        %v2045 = vunpack.c.l.b16 %v2007
        %v2046 = vunpack.c.h.b16 %v2007
        %v2047 = vunpack.c.l.b16 %v2008
        %v2048 = vunpack.c.h.b16 %v2008
        %v2049 = vunpack.c.l.b16 %v2009
        %v2050 = vunpack.c.h.b16 %v2009
        %v2051 = vunpack.c.l.b16 %v2010
        %v2052 = vunpack.c.h.b16 %v2010
        %v2053 = vunpack.c.l.b16 %v2011
        %v2054 = vunpack.c.h.b16 %v2011
        %v2055 = vunpack.c.l.b16 %v2012
        %v2056 = vunpack.c.h.b16 %v2012
        %v2057 = vunpack.c.l.b16 %v2013
        %v2058 = vunpack.c.h.b16 %v2013
        %v2059 = vunpack.c.l.b16 %v2014
        %v2060 = vunpack.c.h.b16 %v2014
        %v2061 = vunpack.c.l.b16 %v2015
        %v2062 = vunpack.c.h.b16 %v2015
        %v2063 = vunpack.c.l.b16 %v2016
        %v2064 = vunpack.c.h.b16 %v2016
        %v2065 = vpack.c.b16 %v2035, %v2033
        %v2066 = vpack.c.b16 %v2036, %v2034
        %v2067 = vpack.c.b16 %v2039, %v2037
        %v2068 = vpack.c.b16 %v2040, %v2038
        %v2069 = vpack.c.b16 %v2043, %v2041
        %v2070 = vpack.c.b16 %v2044, %v2042
        %v2071 = vpack.c.b16 %v2047, %v2045
        %v2072 = vpack.c.b16 %v2048, %v2046
        %v2073 = vpack.c.b16 %v2051, %v2049
        %v2074 = vpack.c.b16 %v2052, %v2050
        %v2075 = vpack.c.b16 %v2055, %v2053
        %v2076 = vpack.c.b16 %v2056, %v2054
        %v2077 = vpack.c.b16 %v2059, %v2057
        %v2078 = vpack.c.b16 %v2060, %v2058
        %v2079 = vpack.c.b16 %v2063, %v2061
        %v2080 = vpack.c.b16 %v2064, %v2062
        %2097 = vmatprep.subr.bf16.mxu0 0
        %2098 = vmatpush1.bf16.msra.mxu0 %v1835
        %2099 = vmatprep.subr.bf16.mxu0 0
        %2100 = vmatpush1.bf16.msra.mxu0 %v1846
        %2101 = vmatprep.subr.bf16.mxu0 0
        %2102 = vmatpush1.bf16.msra.mxu0 %v1857
        %2103 = vmatprep.subr.bf16.mxu0 0
        %2104 = vmatpush1.bf16.msra.mxu0 %v1868
        %2105 = vmatprep.subr.bf16.mxu0 0
        %2106 = vmatpush1.bf16.msra.mxu0 %v1879
        %2107 = vmatprep.subr.bf16.mxu0 0
        %2108 = vmatpush1.bf16.msra.mxu0 %v1890
        %2109 = vmatprep.subr.bf16.mxu0 0
        %2110 = vmatpush1.bf16.msra.mxu0 %v1901
        %2111 = vmatprep.subr.bf16.mxu0 0
        %2112 = vmatpush1.bf16.msra.mxu0 %v1912
        %2113 = vmatprep.subr.bf16.mxu0 0
        %2114 = vmatpush1.bf16.msra.mxu0 %v1923
        %2115 = vmatprep.subr.bf16.mxu0 0
        %2116 = vmatpush1.bf16.msra.mxu0 %v1934
        %2117 = vmatprep.subr.bf16.mxu0 0
        %2118 = vmatpush1.bf16.msra.mxu0 %v1945
        %2119 = vmatprep.subr.bf16.mxu0 0
        %2120 = vmatpush1.bf16.msra.mxu0 %v1956
        %2121 = vmatprep.subr.bf16.mxu0 0
        %2122 = vmatpush1.bf16.msra.mxu0 %v1967
        %2123 = vmatprep.subr.bf16.mxu0 0
        %2124 = vmatpush1.bf16.msra.mxu0 %v1978
        %2125 = vmatprep.subr.bf16.mxu0 0
        %2126 = vmatpush1.bf16.msra.mxu0 %v1989
        %2127 = vmatprep.subr.bf16.mxu0 0
        %2128 = vmatpush1.bf16.msra.mxu0 %v2000
        %2129 = vmatprep.mubr.bf16.mxu0 %v2066
        %2130 = vmatmul.mubr.bf16.gmra.mrb[0].mxu0 %v2065
        %v2131 = vpop.f32.mrb[0].mxu0
        %v2132 = vadd.f32 0.0, %v2131
        %v2133 = vpop.f32.mrb[0].mxu0
        %v2134 = vpop.f32.mrb[0].mxu0
        %v2135 = vadd.f32 0.0, %v2134
        %v2136 = vpop.f32.mrb[0].mxu0
        %2137 = vmatprep.mubr.bf16.mxu0 %v2068
        %2138 = vmatmul.mubr.bf16.gmra.mrb[0].mxu0 %v2067
        %v2139 = vpop.f32.mrb[0].mxu0
        %v2140 = vadd.f32 0.0, %v2139
        %v2141 = vpop.f32.mrb[0].mxu0
        %v2142 = vpop.f32.mrb[0].mxu0
        %v2143 = vadd.f32 0.0, %v2142
        %v2144 = vpop.f32.mrb[0].mxu0
        %2145 = vmatprep.mubr.bf16.mxu0 %v2070
        %2146 = vmatmul.mubr.bf16.gmra.mrb[0].mxu0 %v2069
        %v2147 = vpop.f32.mrb[0].mxu0
        %v2148 = vadd.f32 0.0, %v2147
        %v2149 = vpop.f32.mrb[0].mxu0
        %v2150 = vpop.f32.mrb[0].mxu0
        %v2151 = vadd.f32 0.0, %v2150
        %v2152 = vpop.f32.mrb[0].mxu0
        %2153 = vmatprep.mubr.bf16.mxu0 %v2072
        %2154 = vmatmul.mubr.bf16.gmra.mrb[0].mxu0 %v2071
        %v2155 = vpop.f32.mrb[0].mxu0
        %v2156 = vadd.f32 0.0, %v2155
        %v2157 = vpop.f32.mrb[0].mxu0
        %v2158 = vpop.f32.mrb[0].mxu0
        %v2159 = vadd.f32 0.0, %v2158
        %v2160 = vpop.f32.mrb[0].mxu0
        %2161 = vmatprep.mubr.bf16.mxu0 %v2074
        %2162 = vmatmul.mubr.bf16.gmra.mrb[0].mxu0 %v2073
        %v2163 = vpop.f32.mrb[0].mxu0
        %v2164 = vadd.f32 0.0, %v2163
        %v2165 = vpop.f32.mrb[0].mxu0
        %v2166 = vpop.f32.mrb[0].mxu0
        %v2167 = vadd.f32 0.0, %v2166
        %v2168 = vpop.f32.mrb[0].mxu0
        %2169 = vmatprep.mubr.bf16.mxu0 %v2076
        %2170 = vmatmul.mubr.bf16.gmra.mrb[0].mxu0 %v2075
        %v2171 = vpop.f32.mrb[0].mxu0
        %v2172 = vadd.f32 0.0, %v2171
        %v2173 = vpop.f32.mrb[0].mxu0
        %v2174 = vpop.f32.mrb[0].mxu0
        %v2175 = vadd.f32 0.0, %v2174
        %v2176 = vpop.f32.mrb[0].mxu0
        %2177 = vmatprep.mubr.bf16.mxu0 %v2078
        %2178 = vmatmul.mubr.bf16.gmra.mrb[0].mxu0 %v2077
        %v2179 = vpop.f32.mrb[0].mxu0
        %v2180 = vadd.f32 0.0, %v2179
        %v2181 = vpop.f32.mrb[0].mxu0
        %v2182 = vpop.f32.mrb[0].mxu0
        %v2183 = vadd.f32 0.0, %v2182
        %v2184 = vpop.f32.mrb[0].mxu0
        %2185 = vmatprep.mubr.bf16.mxu0 %v2080
        %2186 = vmatmul.mubr.bf16.gmra.mrb[0].mxu0 %v2079
        %v2187 = vpop.f32.mrb[0].mxu0
        %v2188 = vadd.f32 0.0, %v2187
        %v2189 = vpop.f32.mrb[0].mxu0
        %v2190 = vpop.f32.mrb[0].mxu0
        %v2191 = vadd.f32 0.0, %v2190
        %v2192 = vpop.f32.mrb[0].mxu0
        %2193 = vdwg.mxu0
        %v2194 = vpack.c.bf16 %v2135, %v2132
        %v2195 = vpack.c.bf16 %v2143, %v2140
        %v2196 = vpack.c.bf16 %v2151, %v2148
        %v2197 = vpack.c.bf16 %v2159, %v2156
        %v2198 = vpack.c.bf16 %v2167, %v2164
        %v2199 = vpack.c.bf16 %v2175, %v2172
        %v2200 = vpack.c.bf16 %v2183, %v2180
        %v2201 = vpack.c.bf16 %v2191, %v2188
        %v2210 = vunpack.c.l.b16 %v2194
        %v2211 = vunpack.c.h.b16 %v2194
        %v2212 = vunpack.c.l.b16 %v2195
        %v2213 = vunpack.c.h.b16 %v2195
        %v2214 = vunpack.c.l.b16 %v2196
        %v2215 = vunpack.c.h.b16 %v2196
        %v2216 = vunpack.c.l.b16 %v2197
        %v2217 = vunpack.c.h.b16 %v2197
        %v2218 = vunpack.c.l.b16 %v2198
        %v2219 = vunpack.c.h.b16 %v2198
        %v2220 = vunpack.c.l.b16 %v2199
        %v2221 = vunpack.c.h.b16 %v2199
        %v2222 = vunpack.c.l.b16 %v2200
        %v2223 = vunpack.c.h.b16 %v2200
        %v2224 = vunpack.c.l.b16 %v2201
        %v2225 = vunpack.c.h.b16 %v2201
        %v2226 = vpack.c.b16 %v2210, %v2210
        %v2227 = vpack.c.b16 %v2211, %v2211
        %v2228 = vpack.c.b16 %v2212, %v2212
        %v2229 = vpack.c.b16 %v2213, %v2213
        %v2230 = vpack.c.b16 %v2214, %v2214
        %v2231 = vpack.c.b16 %v2215, %v2215
        %v2232 = vpack.c.b16 %v2216, %v2216
        %v2233 = vpack.c.b16 %v2217, %v2217
        %v2234 = vpack.c.b16 %v2218, %v2218
        %v2235 = vpack.c.b16 %v2219, %v2219
        %v2236 = vpack.c.b16 %v2220, %v2220
        %v2237 = vpack.c.b16 %v2221, %v2221
        %v2238 = vpack.c.b16 %v2222, %v2222
        %v2239 = vpack.c.b16 %v2223, %v2223
        %v2240 = vpack.c.b16 %v2224, %v2224
        %v2241 = vpack.c.b16 %v2225, %v2225
        %vm2258 = vcmask 125952
        %2259 = vst.msk [vmem:[%s219] sm:$0xf] %vm2258, %v2226
        %2260 = vst.msk [vmem:[%s219 + $0x4] sm:$0xf] %vm2258, %v2227
        %2261 = vst.msk [vmem:[%s219 + $0x8] sm:$0xf] %vm2258, %v2228
        %2262 = vst.msk [vmem:[%s219 + $0xc] sm:$0xf] %vm2258, %v2229
        %2263 = vst.msk [vmem:[%s219 + $0x10] sm:$0xf] %vm2258, %v2230
        %2264 = vst.msk [vmem:[%s219 + $0x14] sm:$0xf] %vm2258, %v2231
        %2265 = vst.msk [vmem:[%s219 + $0x18] sm:$0xf] %vm2258, %v2232
        %2266 = vst.msk [vmem:[%s219 + $0x1c] sm:$0xf] %vm2258, %v2233
        %2267 = vst.msk [vmem:[%s219 + $0x20] sm:$0xf] %vm2258, %v2234
        %2268 = vst.msk [vmem:[%s219 + $0x24] sm:$0xf] %vm2258, %v2235
        %2269 = vst.msk [vmem:[%s219 + $0x28] sm:$0xf] %vm2258, %v2236
        %2270 = vst.msk [vmem:[%s219 + $0x2c] sm:$0xf] %vm2258, %v2237
        %2271 = vst.msk [vmem:[%s219 + $0x30] sm:$0xf] %vm2258, %v2238
        %2272 = vst.msk [vmem:[%s219 + $0x34] sm:$0xf] %vm2258, %v2239
        %2273 = vst.msk [vmem:[%s219 + $0x38] sm:$0xf] %vm2258, %v2240
        %2274 = vst.msk [vmem:[%s219 + $0x3c] sm:$0xf] %vm2258, %v2241
        %p2275 = scmp.lt.s32.totalorder %s19, 1
        %s2276 = scalar_select %p2275, %s19, 1
        %p2277 = scmp.lt.s32.totalorder %s20, 0
        %s2278 = scalar_select %p2277, %s20, 0
        %s2279 = smul.addr %s2276, 16
        %s2280 = sadd.s32 %s2278, %s2279
        %s2281 = smul.addr %s2280, 4
        %s2282 = scalar_lea.vmem %s3, %s2281
        // Predicated region
        $region37: #{tpu_custom_call.1} parent=31 // pred_check
          %p2283 = pneg %p117
        $region38: #{tpu_custom_call.1} parent=31 // pred_check_branch
          %2285 = sbr.rel (%p2283) target = $region40
        $region39: #{tpu_custom_call.1} parent=31 // pred_region
          _
        $region40: #{tpu_custom_call.1} parent=31 // pred_fallthru
          _
      $region32: #{tpu_custom_call.1} parent=5 // pred_fallthru
        _
      %p2286 = scmp.le.s32.totalorder 2, %s10
      // Predicated region
      $region41: #{tpu_custom_call.1} parent=5 // pred_check
        %p2287 = pneg %p2286
      $region42: #{tpu_custom_call.1} parent=5 // pred_check_branch
        %2289 = sbr.rel (%p2287) target = $region44
      $region43: #{tpu_custom_call.1} parent=5 // pred_region
        %s2290 = ssub.s32 %s10, 2
        // Predicated region
        $region45: #{tpu_custom_call.1} parent=43 // pred_check
          %p2291 = pneg %p123
        $region46: #{tpu_custom_call.1} parent=43 // pred_check_branch
          %2293 = sbr.rel (%p2291) target = $region48
        $region47: #{tpu_custom_call.1} parent=43 // pred_region
          %p2294 = scmp.lt.s32.totalorder %s21, 1
          %s2295 = scalar_select %p2294, %s21, 1
          %p2296 = scmp.lt.s32.totalorder %s22, 0
          %s2297 = scalar_select %p2296, %s22, 0
          %s2298 = smul.addr %s2295, 16
          %s2299 = sadd.s32 %s2297, %s2298
          %s2300 = smul.addr %s2299, 4
          %s2301 = scalar_lea.vmem %s3, %s2300
        $region48: #{tpu_custom_call.1} parent=43 // pred_fallthru
          _
      $region44: #{tpu_custom_call.1} parent=5 // pred_fallthru
        _
    $region6: #{tpu_custom_call.1} parent=1 // loop_footer
      %s14 = sadd.s32 1, %s10
    $region7: #{tpu_custom_call.1} parent=1 // loop_footer_branch
      %9 = sbr.rel target = $region3
    $region8: #{tpu_custom_call.1} parent=1 // loop_exit
      _
    %2302 = vsyncpa [#allocation3], 1
    %s2303 = scalar_lea.sflag [#allocation3], 1
    %2304 = vsyncpa %s2303, 1

</llo_original>
